<compile_context>
chip_gen: v7x
topology: tpu7x:2x2x1
jax: 0.10.0
libtpu: 0.0.40
codegen_flags: <defaults>
</compile_context>

<pallas_src>
import jax
import jax.numpy as jnp
import numpy as np
from jax import lax
from jax.experimental import pallas as pl
from jax.experimental.pallas import tpu as pltpu

INPUT_SIZE = 28
HIDDEN = 64
NUM_CLASSES = 10

B_PAD = 8          # sublane-aligned batch (4 -> 8)
K_PAD = 128        # fused [h | x] contraction dim (64 + 28 = 92 -> 128)
GP = 128           # per-gate lane-padded width (64 -> 128); gates are (B_PAD, 4*GP)
C_PAD = 128        # lane-dense class dim (10 -> 128)
assert GP == K_PAD  # h (B_PAD, GP) is fed straight back as the left matmul operand


def lstm_kernel(xp_ref, wcat_ref, b_ref, wfc_ref, bfc_ref, out_ref):
    """All T LSTM steps + final FC in one invocation.

    xp_ref : (T, B_PAD, K_PAD)  x_t pre-placed at lanes [HIDDEN : HIDDEN+INPUT_SIZE]
    wcat   : (K_PAD, 4*GP)      fused [W_hh^T ; W_ih^T], per-gate lane-padded
    b_ref  : (1, 4*GP)          b_ih + b_hh, per-gate lane-padded
    wfc    : (K_PAD, C_PAD)     W_fc^T, padded
    bfc    : (1, C_PAD)
    out    : (B_PAD, C_PAD)
    """
    T = xp_ref.shape[0]

    # Hoist weight load and bias broadcast out of the recurrence (stay in vregs).
    w_cat = wcat_ref[...]                                    # (K_PAD, 4*GP)
    bias = jnp.broadcast_to(b_ref[...], (B_PAD, 4 * GP))     # (B_PAD, 4*GP)

    def step(t, carry):
        h, c = carry                       # (B_PAD, GP) each; real values in lanes [0:HIDDEN]
        # h's padded lanes are exactly 0 and xp's h-lanes are 0 -> the add IS the concat.
        xh = h + xp_ref[t]                 # (B_PAD, K_PAD)
        gates = jnp.dot(xh, w_cat, preferred_element_type=jnp.float32) + bias
        # TODO(synk): could route sigmoid through pl.reciprocal(approx=True) on the EUP,
        # but the approximate path risks exceeding the 1e-5 reference tolerance.
        i_g = jax.nn.sigmoid(gates[:, 0 * GP:1 * GP])
        f_g = jax.nn.sigmoid(gates[:, 1 * GP:2 * GP])
        g_g = jnp.tanh(gates[:, 2 * GP:3 * GP])
        o_g = jax.nn.sigmoid(gates[:, 3 * GP:4 * GP])
        c_new = f_g * c + i_g * g_g        # padded lanes: 0.5*0 + 0.5*0 = 0 exactly
        h_new = o_g * jnp.tanh(c_new)      # padded lanes: 0.5*tanh(0)   = 0 exactly
        return (h_new, c_new)

    h0 = jnp.zeros((B_PAD, GP), jnp.float32)
    c0 = jnp.zeros((B_PAD, GP), jnp.float32)
    h, _ = lax.fori_loop(0, T, step, (h0, c0), unroll=True)

    out_ref[...] = (jnp.dot(h, wfc_ref[...], preferred_element_type=jnp.float32)
                    + bfc_ref[...])


def net_lstm_forward(x, params):
    """x: (B, T, INPUT_SIZE) float32, batch_first like the PyTorch module."""
    B, T, I = x.shape
    assert I == INPUT_SIZE and B <= B_PAD
    w_ih, w_hh, b_ih, b_hh, w_fc, b_fc = params
    H = HIDDEN

    # Time-major x placed into the fused [h | x | pad] lane layout.
    x_tm = jnp.transpose(x, (1, 0, 2)).astype(jnp.float32)        # (T, B, I)
    xp = jnp.zeros((T, B_PAD, K_PAD), jnp.float32)
    xp = xp.at[:, :B, H:H + I].set(x_tm)

    # Fused, per-gate lane-padded weight matrix and bias.
    w_cat = jnp.zeros((K_PAD, 4 * GP), jnp.float32)
    b_cat = jnp.zeros((1, 4 * GP), jnp.float32)
    b_sum = b_ih + b_hh
    for g in range(4):
        w_cat = w_cat.at[:H, g * GP:g * GP + H].set(w_hh[g * H:(g + 1) * H, :].T)
        w_cat = w_cat.at[H:H + I, g * GP:g * GP + H].set(w_ih[g * H:(g + 1) * H, :].T)
        b_cat = b_cat.at[0, g * GP:g * GP + H].set(b_sum[g * H:(g + 1) * H])

    # Lane-dense FC weights / bias (classes padded to 128).
    wfc_pad = jnp.zeros((K_PAD, C_PAD), jnp.float32).at[:H, :NUM_CLASSES].set(w_fc.T)
    bfc_pad = jnp.zeros((1, C_PAD), jnp.float32).at[0, :NUM_CLASSES].set(b_fc)

    vmem = lambda: pl.BlockSpec(memory_space=pltpu.MemorySpace.VMEM)
    out_pad = pl.pallas_call(
        lstm_kernel,
        out_shape=jax.ShapeDtypeStruct((B_PAD, C_PAD), jnp.float32),
        in_specs=[vmem(), vmem(), vmem(), vmem(), vmem()],
        out_specs=vmem(),
    )(xp, w_cat, b_cat, wfc_pad, bfc_pad)

    return out_pad[:B, :NUM_CLASSES]


def reference_forward(x, params):
    """Pure-JAX reference mirroring torch.nn.LSTM + Linear."""
    w_ih, w_hh, b_ih, b_hh, w_fc, b_fc = params
    B = x.shape[0]
    h = jnp.zeros((B, HIDDEN), jnp.float32)
    c = jnp.zeros((B, HIDDEN), jnp.float32)

    def step(carry, x_t):
        h, c = carry
        gates = x_t @ w_ih.T + b_ih + h @ w_hh.T + b_hh
        i = jax.nn.sigmoid(gates[:, 0 * HIDDEN:1 * HIDDEN])
        f = jax.nn.sigmoid(gates[:, 1 * HIDDEN:2 * HIDDEN])
        g = jnp.tanh(gates[:, 2 * HIDDEN:3 * HIDDEN])
        o = jax.nn.sigmoid(gates[:, 3 * HIDDEN:4 * HIDDEN])
        c = f * c + i * g
        h = o * jnp.tanh(c)
        return (h, c), None

    (h, _), _ = jax.lax.scan(step, (h, c), jnp.transpose(x, (1, 0, 2)))
    return h @ w_fc.T + b_fc


def init_params(key):
    """Deterministic init matching torch shapes (uniform ±1/sqrt(hidden))."""
    k = 1.0 / np.sqrt(HIDDEN)
    keys = jax.random.split(key, 6)
    w_ih = jax.random.uniform(keys[0], (4 * HIDDEN, INPUT_SIZE), jnp.float32, -k, k)
    w_hh = jax.random.uniform(keys[1], (4 * HIDDEN, HIDDEN), jnp.float32, -k, k)
    b_ih = jax.random.uniform(keys[2], (4 * HIDDEN,), jnp.float32, -k, k)
    b_hh = jax.random.uniform(keys[3], (4 * HIDDEN,), jnp.float32, -k, k)
    w_fc = jax.random.uniform(keys[4], (NUM_CLASSES, HIDDEN), jnp.float32, -k, k)
    b_fc = jax.random.uniform(keys[5], (NUM_CLASSES,), jnp.float32, -k, k)
    return (w_ih, w_hh, b_ih, b_hh, w_fc, b_fc)


if __name__ == "__main__":
    key = jax.random.PRNGKey(0)
    k_x, k_p = jax.random.split(key)

    B, T = 4, 8                                   # small batch / seq; input_size fixed at 28
    x = jax.random.normal(k_x, (B, T, INPUT_SIZE), jnp.float32)
    params = init_params(k_p)

    out = net_lstm_forward(x, params)
    out = jax.block_until_ready(out)

    ref = jax.block_until_ready(reference_forward(x, params))
    np.testing.assert_allclose(np.asarray(out), np.asarray(ref), rtol=1e-5, atol=1e-5)

    print("KERNEL_OK")
</pallas_src>

<mosaic_0001>
module attributes {stable_mosaic.version = 11 : i64} {
  func.func @lstm_kernel(%arg0: memref<8x8x128xf32, #tpu.memory_space<vmem>>, %arg1: memref<128x512xf32, #tpu.memory_space<vmem>>, %arg2: memref<1x512xf32, #tpu.memory_space<vmem>>, %arg3: memref<128x128xf32, #tpu.memory_space<vmem>>, %arg4: memref<1x128xf32, #tpu.memory_space<vmem>>, %arg5: memref<8x128xf32, #tpu.memory_space<vmem>>) attributes {dimension_semantics = [], scalar_prefetch = 0 : i64, scratch_operands = 0 : i64, tpu.core_type = #tpu.core_type<tc>} {
    %c0 = arith.constant 0 : index
    %c0_0 = arith.constant 0 : index
    %0 = vector.load %arg1[%c0, %c0_0] : memref<128x512xf32, #tpu.memory_space<vmem>>, vector<128x512xf32>
    %c0_1 = arith.constant 0 : index
    %c0_2 = arith.constant 0 : index
    %1 = vector.load %arg2[%c0_1, %c0_2] : memref<1x512xf32, #tpu.memory_space<vmem>>, vector<1x512xf32>
    %2 = vector.shape_cast %1 : vector<1x512xf32> to vector<1x512xf32>
    %3 = vector.broadcast %2 : vector<1x512xf32> to vector<8x512xf32>
    %cst = arith.constant 0.000000e+00 : f32
    %4 = vector.broadcast %cst : f32 to vector<8x128xf32>
    %cst_3 = arith.constant 0.000000e+00 : f32
    %5 = vector.broadcast %cst_3 : f32 to vector<8x128xf32>
    %c0_i32 = arith.constant 0 : i32
    %6 = arith.index_cast %c0_i32 : i32 to index
    %c0_4 = arith.constant 0 : index
    %c0_5 = arith.constant 0 : index
    %7 = vector.load %arg0[%6, %c0_4, %c0_5] : memref<8x8x128xf32, #tpu.memory_space<vmem>>, vector<1x8x128xf32>
    %8 = vector.shape_cast %7 : vector<1x8x128xf32> to vector<8x128xf32>
    %9 = arith.addf %4, %8 : vector<8x128xf32>
    %cst_6 = arith.constant dense<0.000000e+00> : vector<8x512xf32>
    %10 = tpu.matmul %9, %0, %cst_6 {dimension_numbers = #tpu.dot_dimension_numbers<[1], [0], [0], [1], [0, 0, 1, 1], [], []>} : vector<8x128xf32>, vector<128x512xf32>, vector<8x512xf32> -> vector<8x512xf32>
    %11 = arith.addf %10, %3 : vector<8x512xf32>
    %12 = vector.extract_strided_slice %11 {offsets = [0, 0], sizes = [8, 128], strides = [1, 1]} : vector<8x512xf32> to vector<8x128xf32>
    %13 = arith.negf %12 : vector<8x128xf32>
    %14 = math.exp %13 : vector<8x128xf32>
    %cst_7 = arith.constant 1.000000e+00 : f32
    %15 = vector.broadcast %cst_7 : f32 to vector<8x128xf32>
    %16 = arith.addf %15, %14 : vector<8x128xf32>
    %17 = arith.divf %15, %16 : vector<8x128xf32>
    %18 = vector.extract_strided_slice %11 {offsets = [0, 128], sizes = [8, 128], strides = [1, 1]} : vector<8x512xf32> to vector<8x128xf32>
    %19 = arith.negf %18 : vector<8x128xf32>
    %20 = math.exp %19 : vector<8x128xf32>
    %cst_8 = arith.constant 1.000000e+00 : f32
    %21 = vector.broadcast %cst_8 : f32 to vector<8x128xf32>
    %22 = arith.addf %21, %20 : vector<8x128xf32>
    %23 = arith.divf %21, %22 : vector<8x128xf32>
    %24 = vector.extract_strided_slice %11 {offsets = [0, 256], sizes = [8, 128], strides = [1, 1]} : vector<8x512xf32> to vector<8x128xf32>
    %25 = math.tanh %24 : vector<8x128xf32>
    %26 = vector.extract_strided_slice %11 {offsets = [0, 384], sizes = [8, 128], strides = [1, 1]} : vector<8x512xf32> to vector<8x128xf32>
    %27 = arith.negf %26 : vector<8x128xf32>
    %28 = math.exp %27 : vector<8x128xf32>
    %cst_9 = arith.constant 1.000000e+00 : f32
    %29 = vector.broadcast %cst_9 : f32 to vector<8x128xf32>
    %30 = arith.addf %29, %28 : vector<8x128xf32>
    %31 = arith.divf %29, %30 : vector<8x128xf32>
    %32 = arith.mulf %23, %5 : vector<8x128xf32>
    %33 = arith.mulf %17, %25 : vector<8x128xf32>
    %34 = arith.addf %32, %33 : vector<8x128xf32>
    %35 = math.tanh %34 : vector<8x128xf32>
    %36 = arith.mulf %31, %35 : vector<8x128xf32>
    %c1_i32 = arith.constant 1 : i32
    %37 = arith.index_cast %c1_i32 : i32 to index
    %c0_10 = arith.constant 0 : index
    %c0_11 = arith.constant 0 : index
    %38 = vector.load %arg0[%37, %c0_10, %c0_11] : memref<8x8x128xf32, #tpu.memory_space<vmem>>, vector<1x8x128xf32>
    %39 = vector.shape_cast %38 : vector<1x8x128xf32> to vector<8x128xf32>
    %40 = arith.addf %36, %39 : vector<8x128xf32>
    %cst_12 = arith.constant dense<0.000000e+00> : vector<8x512xf32>
    %41 = tpu.matmul %40, %0, %cst_12 {dimension_numbers = #tpu.dot_dimension_numbers<[1], [0], [0], [1], [0, 0, 1, 1], [], []>} : vector<8x128xf32>, vector<128x512xf32>, vector<8x512xf32> -> vector<8x512xf32>
    %42 = arith.addf %41, %3 : vector<8x512xf32>
    %43 = vector.extract_strided_slice %42 {offsets = [0, 0], sizes = [8, 128], strides = [1, 1]} : vector<8x512xf32> to vector<8x128xf32>
    %44 = arith.negf %43 : vector<8x128xf32>
    %45 = math.exp %44 : vector<8x128xf32>
    %cst_13 = arith.constant 1.000000e+00 : f32
    %46 = vector.broadcast %cst_13 : f32 to vector<8x128xf32>
    %47 = arith.addf %46, %45 : vector<8x128xf32>
    %48 = arith.divf %46, %47 : vector<8x128xf32>
    %49 = vector.extract_strided_slice %42 {offsets = [0, 128], sizes = [8, 128], strides = [1, 1]} : vector<8x512xf32> to vector<8x128xf32>
    %50 = arith.negf %49 : vector<8x128xf32>
    %51 = math.exp %50 : vector<8x128xf32>
    %cst_14 = arith.constant 1.000000e+00 : f32
    %52 = vector.broadcast %cst_14 : f32 to vector<8x128xf32>
    %53 = arith.addf %52, %51 : vector<8x128xf32>
    %54 = arith.divf %52, %53 : vector<8x128xf32>
    %55 = vector.extract_strided_slice %42 {offsets = [0, 256], sizes = [8, 128], strides = [1, 1]} : vector<8x512xf32> to vector<8x128xf32>
    %56 = math.tanh %55 : vector<8x128xf32>
    %57 = vector.extract_strided_slice %42 {offsets = [0, 384], sizes = [8, 128], strides = [1, 1]} : vector<8x512xf32> to vector<8x128xf32>
    %58 = arith.negf %57 : vector<8x128xf32>
    %59 = math.exp %58 : vector<8x128xf32>
    %cst_15 = arith.constant 1.000000e+00 : f32
    %60 = vector.broadcast %cst_15 : f32 to vector<8x128xf32>
    %61 = arith.addf %60, %59 : vector<8x128xf32>
    %62 = arith.divf %60, %61 : vector<8x128xf32>
    %63 = arith.mulf %54, %34 : vector<8x128xf32>
    %64 = arith.mulf %48, %56 : vector<8x128xf32>
    %65 = arith.addf %63, %64 : vector<8x128xf32>
    %66 = math.tanh %65 : vector<8x128xf32>
    %67 = arith.mulf %62, %66 : vector<8x128xf32>
    %c2_i32 = arith.constant 2 : i32
    %68 = arith.index_cast %c2_i32 : i32 to index
    %c0_16 = arith.constant 0 : index
    %c0_17 = arith.constant 0 : index
    %69 = vector.load %arg0[%68, %c0_16, %c0_17] : memref<8x8x128xf32, #tpu.memory_space<vmem>>, vector<1x8x128xf32>
    %70 = vector.shape_cast %69 : vector<1x8x128xf32> to vector<8x128xf32>
    %71 = arith.addf %67, %70 : vector<8x128xf32>
    %cst_18 = arith.constant dense<0.000000e+00> : vector<8x512xf32>
    %72 = tpu.matmul %71, %0, %cst_18 {dimension_numbers = #tpu.dot_dimension_numbers<[1], [0], [0], [1], [0, 0, 1, 1], [], []>} : vector<8x128xf32>, vector<128x512xf32>, vector<8x512xf32> -> vector<8x512xf32>
    %73 = arith.addf %72, %3 : vector<8x512xf32>
    %74 = vector.extract_strided_slice %73 {offsets = [0, 0], sizes = [8, 128], strides = [1, 1]} : vector<8x512xf32> to vector<8x128xf32>
    %75 = arith.negf %74 : vector<8x128xf32>
    %76 = math.exp %75 : vector<8x128xf32>
    %cst_19 = arith.constant 1.000000e+00 : f32
    %77 = vector.broadcast %cst_19 : f32 to vector<8x128xf32>
    %78 = arith.addf %77, %76 : vector<8x128xf32>
    %79 = arith.divf %77, %78 : vector<8x128xf32>
    %80 = vector.extract_strided_slice %73 {offsets = [0, 128], sizes = [8, 128], strides = [1, 1]} : vector<8x512xf32> to vector<8x128xf32>
    %81 = arith.negf %80 : vector<8x128xf32>
    %82 = math.exp %81 : vector<8x128xf32>
    %cst_20 = arith.constant 1.000000e+00 : f32
    %83 = vector.broadcast %cst_20 : f32 to vector<8x128xf32>
    %84 = arith.addf %83, %82 : vector<8x128xf32>
    %85 = arith.divf %83, %84 : vector<8x128xf32>
    %86 = vector.extract_strided_slice %73 {offsets = [0, 256], sizes = [8, 128], strides = [1, 1]} : vector<8x512xf32> to vector<8x128xf32>
    %87 = math.tanh %86 : vector<8x128xf32>
    %88 = vector.extract_strided_slice %73 {offsets = [0, 384], sizes = [8, 128], strides = [1, 1]} : vector<8x512xf32> to vector<8x128xf32>
    %89 = arith.negf %88 : vector<8x128xf32>
    %90 = math.exp %89 : vector<8x128xf32>
    %cst_21 = arith.constant 1.000000e+00 : f32
    %91 = vector.broadcast %cst_21 : f32 to vector<8x128xf32>
    %92 = arith.addf %91, %90 : vector<8x128xf32>
    %93 = arith.divf %91, %92 : vector<8x128xf32>
    %94 = arith.mulf %85, %65 : vector<8x128xf32>
    %95 = arith.mulf %79, %87 : vector<8x128xf32>
    %96 = arith.addf %94, %95 : vector<8x128xf32>
    %97 = math.tanh %96 : vector<8x128xf32>
    %98 = arith.mulf %93, %97 : vector<8x128xf32>
    %c3_i32 = arith.constant 3 : i32
    %99 = arith.index_cast %c3_i32 : i32 to index
    %c0_22 = arith.constant 0 : index
    %c0_23 = arith.constant 0 : index
    %100 = vector.load %arg0[%99, %c0_22, %c0_23] : memref<8x8x128xf32, #tpu.memory_space<vmem>>, vector<1x8x128xf32>
    %101 = vector.shape_cast %100 : vector<1x8x128xf32> to vector<8x128xf32>
    %102 = arith.addf %98, %101 : vector<8x128xf32>
    %cst_24 = arith.constant dense<0.000000e+00> : vector<8x512xf32>
    %103 = tpu.matmul %102, %0, %cst_24 {dimension_numbers = #tpu.dot_dimension_numbers<[1], [0], [0], [1], [0, 0, 1, 1], [], []>} : vector<8x128xf32>, vector<128x512xf32>, vector<8x512xf32> -> vector<8x512xf32>
    %104 = arith.addf %103, %3 : vector<8x512xf32>
    %105 = vector.extract_strided_slice %104 {offsets = [0, 0], sizes = [8, 128], strides = [1, 1]} : vector<8x512xf32> to vector<8x128xf32>
    %106 = arith.negf %105 : vector<8x128xf32>
    %107 = math.exp %106 : vector<8x128xf32>
    %cst_25 = arith.constant 1.000000e+00 : f32
    %108 = vector.broadcast %cst_25 : f32 to vector<8x128xf32>
    %109 = arith.addf %108, %107 : vector<8x128xf32>
    %110 = arith.divf %108, %109 : vector<8x128xf32>
    %111 = vector.extract_strided_slice %104 {offsets = [0, 128], sizes = [8, 128], strides = [1, 1]} : vector<8x512xf32> to vector<8x128xf32>
    %112 = arith.negf %111 : vector<8x128xf32>
    %113 = math.exp %112 : vector<8x128xf32>
    %cst_26 = arith.constant 1.000000e+00 : f32
    %114 = vector.broadcast %cst_26 : f32 to vector<8x128xf32>
    %115 = arith.addf %114, %113 : vector<8x128xf32>
    %116 = arith.divf %114, %115 : vector<8x128xf32>
    %117 = vector.extract_strided_slice %104 {offsets = [0, 256], sizes = [8, 128], strides = [1, 1]} : vector<8x512xf32> to vector<8x128xf32>
    %118 = math.tanh %117 : vector<8x128xf32>
    %119 = vector.extract_strided_slice %104 {offsets = [0, 384], sizes = [8, 128], strides = [1, 1]} : vector<8x512xf32> to vector<8x128xf32>
    %120 = arith.negf %119 : vector<8x128xf32>
    %121 = math.exp %120 : vector<8x128xf32>
    %cst_27 = arith.constant 1.000000e+00 : f32
    %122 = vector.broadcast %cst_27 : f32 to vector<8x128xf32>
    %123 = arith.addf %122, %121 : vector<8x128xf32>
    %124 = arith.divf %122, %123 : vector<8x128xf32>
    %125 = arith.mulf %116, %96 : vector<8x128xf32>
    %126 = arith.mulf %110, %118 : vector<8x128xf32>
    %127 = arith.addf %125, %126 : vector<8x128xf32>
    %128 = math.tanh %127 : vector<8x128xf32>
    %129 = arith.mulf %124, %128 : vector<8x128xf32>
    %c4_i32 = arith.constant 4 : i32
    %130 = arith.index_cast %c4_i32 : i32 to index
    %c0_28 = arith.constant 0 : index
    %c0_29 = arith.constant 0 : index
    %131 = vector.load %arg0[%130, %c0_28, %c0_29] : memref<8x8x128xf32, #tpu.memory_space<vmem>>, vector<1x8x128xf32>
    %132 = vector.shape_cast %131 : vector<1x8x128xf32> to vector<8x128xf32>
    %133 = arith.addf %129, %132 : vector<8x128xf32>
    %cst_30 = arith.constant dense<0.000000e+00> : vector<8x512xf32>
    %134 = tpu.matmul %133, %0, %cst_30 {dimension_numbers = #tpu.dot_dimension_numbers<[1], [0], [0], [1], [0, 0, 1, 1], [], []>} : vector<8x128xf32>, vector<128x512xf32>, vector<8x512xf32> -> vector<8x512xf32>
    %135 = arith.addf %134, %3 : vector<8x512xf32>
    %136 = vector.extract_strided_slice %135 {offsets = [0, 0], sizes = [8, 128], strides = [1, 1]} : vector<8x512xf32> to vector<8x128xf32>
    %137 = arith.negf %136 : vector<8x128xf32>
    %138 = math.exp %137 : vector<8x128xf32>
    %cst_31 = arith.constant 1.000000e+00 : f32
    %139 = vector.broadcast %cst_31 : f32 to vector<8x128xf32>
    %140 = arith.addf %139, %138 : vector<8x128xf32>
    %141 = arith.divf %139, %140 : vector<8x128xf32>
    %142 = vector.extract_strided_slice %135 {offsets = [0, 128], sizes = [8, 128], strides = [1, 1]} : vector<8x512xf32> to vector<8x128xf32>
    %143 = arith.negf %142 : vector<8x128xf32>
    %144 = math.exp %143 : vector<8x128xf32>
    %cst_32 = arith.constant 1.000000e+00 : f32
    %145 = vector.broadcast %cst_32 : f32 to vector<8x128xf32>
    %146 = arith.addf %145, %144 : vector<8x128xf32>
    %147 = arith.divf %145, %146 : vector<8x128xf32>
    %148 = vector.extract_strided_slice %135 {offsets = [0, 256], sizes = [8, 128], strides = [1, 1]} : vector<8x512xf32> to vector<8x128xf32>
    %149 = math.tanh %148 : vector<8x128xf32>
    %150 = vector.extract_strided_slice %135 {offsets = [0, 384], sizes = [8, 128], strides = [1, 1]} : vector<8x512xf32> to vector<8x128xf32>
    %151 = arith.negf %150 : vector<8x128xf32>
    %152 = math.exp %151 : vector<8x128xf32>
    %cst_33 = arith.constant 1.000000e+00 : f32
    %153 = vector.broadcast %cst_33 : f32 to vector<8x128xf32>
    %154 = arith.addf %153, %152 : vector<8x128xf32>
    %155 = arith.divf %153, %154 : vector<8x128xf32>
    %156 = arith.mulf %147, %127 : vector<8x128xf32>
    %157 = arith.mulf %141, %149 : vector<8x128xf32>
    %158 = arith.addf %156, %157 : vector<8x128xf32>
    %159 = math.tanh %158 : vector<8x128xf32>
    %160 = arith.mulf %155, %159 : vector<8x128xf32>
    %c5_i32 = arith.constant 5 : i32
    %161 = arith.index_cast %c5_i32 : i32 to index
    %c0_34 = arith.constant 0 : index
    %c0_35 = arith.constant 0 : index
    %162 = vector.load %arg0[%161, %c0_34, %c0_35] : memref<8x8x128xf32, #tpu.memory_space<vmem>>, vector<1x8x128xf32>
    %163 = vector.shape_cast %162 : vector<1x8x128xf32> to vector<8x128xf32>
    %164 = arith.addf %160, %163 : vector<8x128xf32>
    %cst_36 = arith.constant dense<0.000000e+00> : vector<8x512xf32>
    %165 = tpu.matmul %164, %0, %cst_36 {dimension_numbers = #tpu.dot_dimension_numbers<[1], [0], [0], [1], [0, 0, 1, 1], [], []>} : vector<8x128xf32>, vector<128x512xf32>, vector<8x512xf32> -> vector<8x512xf32>
    %166 = arith.addf %165, %3 : vector<8x512xf32>
    %167 = vector.extract_strided_slice %166 {offsets = [0, 0], sizes = [8, 128], strides = [1, 1]} : vector<8x512xf32> to vector<8x128xf32>
    %168 = arith.negf %167 : vector<8x128xf32>
    %169 = math.exp %168 : vector<8x128xf32>
    %cst_37 = arith.constant 1.000000e+00 : f32
    %170 = vector.broadcast %cst_37 : f32 to vector<8x128xf32>
    %171 = arith.addf %170, %169 : vector<8x128xf32>
    %172 = arith.divf %170, %171 : vector<8x128xf32>
    %173 = vector.extract_strided_slice %166 {offsets = [0, 128], sizes = [8, 128], strides = [1, 1]} : vector<8x512xf32> to vector<8x128xf32>
    %174 = arith.negf %173 : vector<8x128xf32>
    %175 = math.exp %174 : vector<8x128xf32>
    %cst_38 = arith.constant 1.000000e+00 : f32
    %176 = vector.broadcast %cst_38 : f32 to vector<8x128xf32>
    %177 = arith.addf %176, %175 : vector<8x128xf32>
    %178 = arith.divf %176, %177 : vector<8x128xf32>
    %179 = vector.extract_strided_slice %166 {offsets = [0, 256], sizes = [8, 128], strides = [1, 1]} : vector<8x512xf32> to vector<8x128xf32>
    %180 = math.tanh %179 : vector<8x128xf32>
    %181 = vector.extract_strided_slice %166 {offsets = [0, 384], sizes = [8, 128], strides = [1, 1]} : vector<8x512xf32> to vector<8x128xf32>
    %182 = arith.negf %181 : vector<8x128xf32>
    %183 = math.exp %182 : vector<8x128xf32>
    %cst_39 = arith.constant 1.000000e+00 : f32
    %184 = vector.broadcast %cst_39 : f32 to vector<8x128xf32>
    %185 = arith.addf %184, %183 : vector<8x128xf32>
    %186 = arith.divf %184, %185 : vector<8x128xf32>
    %187 = arith.mulf %178, %158 : vector<8x128xf32>
    %188 = arith.mulf %172, %180 : vector<8x128xf32>
    %189 = arith.addf %187, %188 : vector<8x128xf32>
    %190 = math.tanh %189 : vector<8x128xf32>
    %191 = arith.mulf %186, %190 : vector<8x128xf32>
    %c6_i32 = arith.constant 6 : i32
    %192 = arith.index_cast %c6_i32 : i32 to index
    %c0_40 = arith.constant 0 : index
    %c0_41 = arith.constant 0 : index
    %193 = vector.load %arg0[%192, %c0_40, %c0_41] : memref<8x8x128xf32, #tpu.memory_space<vmem>>, vector<1x8x128xf32>
    %194 = vector.shape_cast %193 : vector<1x8x128xf32> to vector<8x128xf32>
    %195 = arith.addf %191, %194 : vector<8x128xf32>
    %cst_42 = arith.constant dense<0.000000e+00> : vector<8x512xf32>
    %196 = tpu.matmul %195, %0, %cst_42 {dimension_numbers = #tpu.dot_dimension_numbers<[1], [0], [0], [1], [0, 0, 1, 1], [], []>} : vector<8x128xf32>, vector<128x512xf32>, vector<8x512xf32> -> vector<8x512xf32>
    %197 = arith.addf %196, %3 : vector<8x512xf32>
    %198 = vector.extract_strided_slice %197 {offsets = [0, 0], sizes = [8, 128], strides = [1, 1]} : vector<8x512xf32> to vector<8x128xf32>
    %199 = arith.negf %198 : vector<8x128xf32>
    %200 = math.exp %199 : vector<8x128xf32>
    %cst_43 = arith.constant 1.000000e+00 : f32
    %201 = vector.broadcast %cst_43 : f32 to vector<8x128xf32>
    %202 = arith.addf %201, %200 : vector<8x128xf32>
    %203 = arith.divf %201, %202 : vector<8x128xf32>
    %204 = vector.extract_strided_slice %197 {offsets = [0, 128], sizes = [8, 128], strides = [1, 1]} : vector<8x512xf32> to vector<8x128xf32>
    %205 = arith.negf %204 : vector<8x128xf32>
    %206 = math.exp %205 : vector<8x128xf32>
    %cst_44 = arith.constant 1.000000e+00 : f32
    %207 = vector.broadcast %cst_44 : f32 to vector<8x128xf32>
    %208 = arith.addf %207, %206 : vector<8x128xf32>
    %209 = arith.divf %207, %208 : vector<8x128xf32>
    %210 = vector.extract_strided_slice %197 {offsets = [0, 256], sizes = [8, 128], strides = [1, 1]} : vector<8x512xf32> to vector<8x128xf32>
    %211 = math.tanh %210 : vector<8x128xf32>
    %212 = vector.extract_strided_slice %197 {offsets = [0, 384], sizes = [8, 128], strides = [1, 1]} : vector<8x512xf32> to vector<8x128xf32>
    %213 = arith.negf %212 : vector<8x128xf32>
    %214 = math.exp %213 : vector<8x128xf32>
    %cst_45 = arith.constant 1.000000e+00 : f32
    %215 = vector.broadcast %cst_45 : f32 to vector<8x128xf32>
    %216 = arith.addf %215, %214 : vector<8x128xf32>
    %217 = arith.divf %215, %216 : vector<8x128xf32>
    %218 = arith.mulf %209, %189 : vector<8x128xf32>
    %219 = arith.mulf %203, %211 : vector<8x128xf32>
    %220 = arith.addf %218, %219 : vector<8x128xf32>
    %221 = math.tanh %220 : vector<8x128xf32>
    %222 = arith.mulf %217, %221 : vector<8x128xf32>
    %c7_i32 = arith.constant 7 : i32
    %223 = arith.index_cast %c7_i32 : i32 to index
    %c0_46 = arith.constant 0 : index
    %c0_47 = arith.constant 0 : index
    %224 = vector.load %arg0[%223, %c0_46, %c0_47] : memref<8x8x128xf32, #tpu.memory_space<vmem>>, vector<1x8x128xf32>
    %225 = vector.shape_cast %224 : vector<1x8x128xf32> to vector<8x128xf32>
    %226 = arith.addf %222, %225 : vector<8x128xf32>
    %cst_48 = arith.constant dense<0.000000e+00> : vector<8x512xf32>
    %227 = tpu.matmul %226, %0, %cst_48 {dimension_numbers = #tpu.dot_dimension_numbers<[1], [0], [0], [1], [0, 0, 1, 1], [], []>} : vector<8x128xf32>, vector<128x512xf32>, vector<8x512xf32> -> vector<8x512xf32>
    %228 = arith.addf %227, %3 : vector<8x512xf32>
    %229 = vector.extract_strided_slice %228 {offsets = [0, 0], sizes = [8, 128], strides = [1, 1]} : vector<8x512xf32> to vector<8x128xf32>
    %230 = arith.negf %229 : vector<8x128xf32>
    %231 = math.exp %230 : vector<8x128xf32>
    %cst_49 = arith.constant 1.000000e+00 : f32
    %232 = vector.broadcast %cst_49 : f32 to vector<8x128xf32>
    %233 = arith.addf %232, %231 : vector<8x128xf32>
    %234 = arith.divf %232, %233 : vector<8x128xf32>
    %235 = vector.extract_strided_slice %228 {offsets = [0, 128], sizes = [8, 128], strides = [1, 1]} : vector<8x512xf32> to vector<8x128xf32>
    %236 = arith.negf %235 : vector<8x128xf32>
    %237 = math.exp %236 : vector<8x128xf32>
    %cst_50 = arith.constant 1.000000e+00 : f32
    %238 = vector.broadcast %cst_50 : f32 to vector<8x128xf32>
    %239 = arith.addf %238, %237 : vector<8x128xf32>
    %240 = arith.divf %238, %239 : vector<8x128xf32>
    %241 = vector.extract_strided_slice %228 {offsets = [0, 256], sizes = [8, 128], strides = [1, 1]} : vector<8x512xf32> to vector<8x128xf32>
    %242 = math.tanh %241 : vector<8x128xf32>
    %243 = vector.extract_strided_slice %228 {offsets = [0, 384], sizes = [8, 128], strides = [1, 1]} : vector<8x512xf32> to vector<8x128xf32>
    %244 = arith.negf %243 : vector<8x128xf32>
    %245 = math.exp %244 : vector<8x128xf32>
    %cst_51 = arith.constant 1.000000e+00 : f32
    %246 = vector.broadcast %cst_51 : f32 to vector<8x128xf32>
    %247 = arith.addf %246, %245 : vector<8x128xf32>
    %248 = arith.divf %246, %247 : vector<8x128xf32>
    %249 = arith.mulf %240, %220 : vector<8x128xf32>
    %250 = arith.mulf %234, %242 : vector<8x128xf32>
    %251 = arith.addf %249, %250 : vector<8x128xf32>
    %252 = math.tanh %251 : vector<8x128xf32>
    %253 = arith.mulf %248, %252 : vector<8x128xf32>
    %c8_i32 = arith.constant 8 : i32
    %c0_52 = arith.constant 0 : index
    %c0_53 = arith.constant 0 : index
    %254 = vector.load %arg3[%c0_52, %c0_53] : memref<128x128xf32, #tpu.memory_space<vmem>>, vector<128x128xf32>
    %cst_54 = arith.constant dense<0.000000e+00> : vector<8x128xf32>
    %255 = tpu.matmul %253, %254, %cst_54 {dimension_numbers = #tpu.dot_dimension_numbers<[1], [0], [0], [1], [0, 0, 1, 1], [], []>} : vector<8x128xf32>, vector<128x128xf32>, vector<8x128xf32> -> vector<8x128xf32>
    %c0_55 = arith.constant 0 : index
    %c0_56 = arith.constant 0 : index
    %256 = vector.load %arg4[%c0_55, %c0_56] : memref<1x128xf32, #tpu.memory_space<vmem>>, vector<1x128xf32>
    %257 = vector.broadcast %256 : vector<1x128xf32> to vector<8x128xf32>
    %258 = arith.addf %255, %257 : vector<8x128xf32>
    %c0_57 = arith.constant 0 : index
    %c0_58 = arith.constant 0 : index
    %259 = vector.load %arg5[%c0_57, %c0_58] : memref<8x128xf32, #tpu.memory_space<vmem>>, vector<8x128xf32>
    tpu.vector_store %arg5[%c0_57, %c0_58], %258 {strides = array<i32>} : memref<8x128xf32, #tpu.memory_space<vmem>>, vector<8x128xf32>,
    return
  }
}

</mosaic_0001>

<llo_original>
// kernel: tpu_custom_call.1
$region0: #{tpu_custom_call.1}
  #allocation0 [shape = 'u32[]', space=smem, size = 0x4, offset = 0x4, fixed_abs, tag = 'smem constant byte address 0x4 - core index']
  #allocation1 [shape = 'u32[144,128]{1,0:T(1,128)}', space=vmem, size = 0x12000, scoped, tag = 'internal scratch']
  %s0 = inlined_call_operand.hbm [shape: f32[8,8,128], index: 0, kind: input, shape index: {}]
  %s1 = inlined_call_operand.hbm [shape: f32[128,512], index: 1, kind: input, shape index: {}]
  %s2 = inlined_call_operand.vmem [shape: f32[1,512], index: 2, kind: input, shape index: {}]
  %s3 = inlined_call_operand.hbm [shape: f32[128,128], index: 3, kind: input, shape index: {}]
  %s4 = inlined_call_operand.vmem [shape: f32[1,128], index: 4, kind: input, shape index: {}]
  %s5 = inlined_call_operand.hbm [shape: f32[8,128], index: 5, kind: output, shape index: {}]
  %s6 = sld [smem:[#allocation0]]
  $region42: #{tpu_custom_call.1} parent=0
    _
  %s8 = ssub.s32 1, %s6
  %s9 = scalar_select 0, %s8, %s6
  $region1: #{tpu_custom_call.1} parent=0
    #allocation2 [shape = 'u8[32768]{0}', space=vmem, size = 0x8000, scoped, tag = 'input window, operand 0, single buffered']
    #allocation3 [shape = 's32[1]{0}', space=sflag, size = 0x4, scoped, tag = 'scoped memory for tpu_custom_call.1']
    #allocation4 [shape = 's32[1]{0}', space=sflag, size = 0x4, scoped, tag = 'scoped memory for tpu_custom_call.1']
    #allocation5 [shape = 'u8[262144]{0}', space=vmem, size = 0x40000, scoped, tag = 'input window, operand 1, single buffered']
    #allocation6 [shape = 's32[1]{0}', space=sflag, size = 0x4, scoped, tag = 'scoped memory for tpu_custom_call.1']
    #allocation7 [shape = 'u8[65536]{0}', space=vmem, size = 0x10000, scoped, tag = 'input window, operand 3, single buffered']
    #allocation8 [shape = 'u8[4096]{0}', space=vmem, size = 0x1000, scoped, tag = 'output window, operand 0, single buffered']
    %10 = vsyncpa [#allocation3], 0
    %11 = vsyncpa [#allocation6], 0
    %12 = vsyncpa [#allocation4], 0
    // Predicated region
    $region2: #{tpu_custom_call.1} parent=1 // pred_check
      _
    $region3: #{tpu_custom_call.1} parent=1 // pred_check_branch
      %14 = sbr.rel (0) target = $region5
    $region4: #{tpu_custom_call.1} parent=1 // pred_region
      %s16 = ssub.s32 1024, 1024
      %17 = vsyncadd [#allocation3], %s16
      %s18 = sshll.u32 [#allocation2], 4
      %s19 = int_to_ptr.vmem [resolvable:$true] %s18
      %24 = dma.hbm_to_vmem [thread:$0]  %s0, 1024, %s19, [#allocation3], 128, 128, 8
    $region5: #{tpu_custom_call.1} parent=1 // pred_fallthru
      _
    // Predicated region
    $region6: #{tpu_custom_call.1} parent=1 // pred_check
      _
    $region7: #{tpu_custom_call.1} parent=1 // pred_check_branch
      %26 = sbr.rel (0) target = $region9
    $region8: #{tpu_custom_call.1} parent=1 // pred_region
      %s28 = ssub.s32 8192, 8192
      %29 = vsyncadd [#allocation6], %s28
      %s30 = sshll.u32 [#allocation5], 4
      %s31 = int_to_ptr.vmem [resolvable:$true] %s30
      %36 = dma.hbm_to_vmem [thread:$0]  %s1, 8192, %s31, [#allocation6], 512, 512, 32
    $region9: #{tpu_custom_call.1} parent=1 // pred_fallthru
      _
    // Predicated region
    $region10: #{tpu_custom_call.1} parent=1 // pred_check
      _
    $region11: #{tpu_custom_call.1} parent=1 // pred_check_branch
      %38 = sbr.rel (0) target = $region13
    $region12: #{tpu_custom_call.1} parent=1 // pred_region
      _
    $region13: #{tpu_custom_call.1} parent=1 // pred_fallthru
      _
    // Predicated region
    $region14: #{tpu_custom_call.1} parent=1 // pred_check
      _
    $region15: #{tpu_custom_call.1} parent=1 // pred_check_branch
      %40 = sbr.rel (0) target = $region17
    $region16: #{tpu_custom_call.1} parent=1 // pred_region
      %s42 = ssub.s32 2048, 2048
      %43 = vsyncadd [#allocation6], %s42
      %s44 = sshll.u32 [#allocation7], 4
      %s45 = int_to_ptr.vmem [resolvable:$true] %s44
      %50 = dma.hbm_to_vmem [thread:$0]  %s3, 2048, %s45, [#allocation6], 128, 128, 8
    $region17: #{tpu_custom_call.1} parent=1 // pred_fallthru
      _
    // Predicated region
    $region18: #{tpu_custom_call.1} parent=1 // pred_check
      _
    $region19: #{tpu_custom_call.1} parent=1 // pred_check_branch
      %52 = sbr.rel (0) target = $region21
    $region20: #{tpu_custom_call.1} parent=1 // pred_region
      _
    $region21: #{tpu_custom_call.1} parent=1 // pred_fallthru
      _
    // Predicated region
    $region22: #{tpu_custom_call.1} parent=1 // pred_check
      _
    $region23: #{tpu_custom_call.1} parent=1 // pred_check_branch
      %54 = sbr.rel (0) target = $region25
    $region24: #{tpu_custom_call.1} parent=1 // pred_region
      %55 = dma.done [#allocation3], 1024
    $region25: #{tpu_custom_call.1} parent=1 // pred_fallthru
      _
    // Predicated region
    $region26: #{tpu_custom_call.1} parent=1 // pred_check
      _
    $region27: #{tpu_custom_call.1} parent=1 // pred_check_branch
      %57 = sbr.rel (0) target = $region29
    $region28: #{tpu_custom_call.1} parent=1 // pred_region
      %58 = dma.done [#allocation6], 8192
    $region29: #{tpu_custom_call.1} parent=1 // pred_fallthru
      _
    // Predicated region
    $region30: #{tpu_custom_call.1} parent=1 // pred_check
      _
    $region31: #{tpu_custom_call.1} parent=1 // pred_check_branch
      %60 = sbr.rel (0) target = $region33
    $region32: #{tpu_custom_call.1} parent=1 // pred_region
      %61 = dma.done [#allocation6], 2048
    $region33: #{tpu_custom_call.1} parent=1 // pred_fallthru
      _
    %v62 = vld [vmem:[#allocation5] sm:$0xff]
    %v63 = vld [vmem:[#allocation5 + $0x8] sm:$0xff]
    %v64 = vld [vmem:[#allocation5 + $0x10] sm:$0xff]
    %v65 = vld [vmem:[#allocation5 + $0x18] sm:$0xff]
    %v66 = vld [vmem:[#allocation5 + $0x20] sm:$0xff]
    %v67 = vld [vmem:[#allocation5 + $0x28] sm:$0xff]
    %v68 = vld [vmem:[#allocation5 + $0x30] sm:$0xff]
    %v69 = vld [vmem:[#allocation5 + $0x38] sm:$0xff]
    %v70 = vld [vmem:[#allocation5 + $0x40] sm:$0xff]
    %v71 = vld [vmem:[#allocation5 + $0x48] sm:$0xff]
    %v72 = vld [vmem:[#allocation5 + $0x50] sm:$0xff]
    %v73 = vld [vmem:[#allocation5 + $0x58] sm:$0xff]
    %v74 = vld [vmem:[#allocation5 + $0x60] sm:$0xff]
    %v75 = vld [vmem:[#allocation5 + $0x68] sm:$0xff]
    %v76 = vld [vmem:[#allocation5 + $0x70] sm:$0xff]
    %v77 = vld [vmem:[#allocation5 + $0x78] sm:$0xff]
    %v78 = vld [vmem:[#allocation5 + $0x80] sm:$0xff]
    %v79 = vld [vmem:[#allocation5 + $0x88] sm:$0xff]
    %v80 = vld [vmem:[#allocation5 + $0x90] sm:$0xff]
    %v81 = vld [vmem:[#allocation5 + $0x98] sm:$0xff]
    %v82 = vld [vmem:[#allocation5 + $0xa0] sm:$0xff]
    %v83 = vld [vmem:[#allocation5 + $0xa8] sm:$0xff]
    %v84 = vld [vmem:[#allocation5 + $0xb0] sm:$0xff]
    %v85 = vld [vmem:[#allocation5 + $0xb8] sm:$0xff]
    %v86 = vld [vmem:[#allocation5 + $0xc0] sm:$0xff]
    %v87 = vld [vmem:[#allocation5 + $0xc8] sm:$0xff]
    %v88 = vld [vmem:[#allocation5 + $0xd0] sm:$0xff]
    %v89 = vld [vmem:[#allocation5 + $0xd8] sm:$0xff]
    %v90 = vld [vmem:[#allocation5 + $0xe0] sm:$0xff]
    %v91 = vld [vmem:[#allocation5 + $0xe8] sm:$0xff]
    %v92 = vld [vmem:[#allocation5 + $0xf0] sm:$0xff]
    %v93 = vld [vmem:[#allocation5 + $0xf8] sm:$0xff]
    %v94 = vld [vmem:[#allocation5 + $0x100] sm:$0xff]
    %v95 = vld [vmem:[#allocation5 + $0x108] sm:$0xff]
    %v96 = vld [vmem:[#allocation5 + $0x110] sm:$0xff]
    %v97 = vld [vmem:[#allocation5 + $0x118] sm:$0xff]
    %v98 = vld [vmem:[#allocation5 + $0x120] sm:$0xff]
    %v99 = vld [vmem:[#allocation5 + $0x128] sm:$0xff]
    %v100 = vld [vmem:[#allocation5 + $0x130] sm:$0xff]
    %v101 = vld [vmem:[#allocation5 + $0x138] sm:$0xff]
    %v102 = vld [vmem:[#allocation5 + $0x140] sm:$0xff]
    %v103 = vld [vmem:[#allocation5 + $0x148] sm:$0xff]
    %v104 = vld [vmem:[#allocation5 + $0x150] sm:$0xff]
    %v105 = vld [vmem:[#allocation5 + $0x158] sm:$0xff]
    %v106 = vld [vmem:[#allocation5 + $0x160] sm:$0xff]
    %v107 = vld [vmem:[#allocation5 + $0x168] sm:$0xff]
    %v108 = vld [vmem:[#allocation5 + $0x170] sm:$0xff]
    %v109 = vld [vmem:[#allocation5 + $0x178] sm:$0xff]
    %v110 = vld [vmem:[#allocation5 + $0x180] sm:$0xff]
    %v111 = vld [vmem:[#allocation5 + $0x188] sm:$0xff]
    %v112 = vld [vmem:[#allocation5 + $0x190] sm:$0xff]
    %v113 = vld [vmem:[#allocation5 + $0x198] sm:$0xff]
    %v114 = vld [vmem:[#allocation5 + $0x1a0] sm:$0xff]
    %v115 = vld [vmem:[#allocation5 + $0x1a8] sm:$0xff]
    %v116 = vld [vmem:[#allocation5 + $0x1b0] sm:$0xff]
    %v117 = vld [vmem:[#allocation5 + $0x1b8] sm:$0xff]
    %v118 = vld [vmem:[#allocation5 + $0x1c0] sm:$0xff]
    %v119 = vld [vmem:[#allocation5 + $0x1c8] sm:$0xff]
    %v120 = vld [vmem:[#allocation5 + $0x1d0] sm:$0xff]
    %v121 = vld [vmem:[#allocation5 + $0x1d8] sm:$0xff]
    %v122 = vld [vmem:[#allocation5 + $0x1e0] sm:$0xff]
    %v123 = vld [vmem:[#allocation5 + $0x1e8] sm:$0xff]
    %v124 = vld [vmem:[#allocation5 + $0x1f0] sm:$0xff]
    %v125 = vld [vmem:[#allocation5 + $0x1f8] sm:$0xff]
    %v126 = vld [vmem:[%s2] sm:$0xf]
    %v128 = vlaneseq
    %v129 = vshrl.u32 %v128, 7
    %v130 = vsub.s32 0, %v129
    %v131 = vrot.slane %v126, %v130
    %v132 = vlaneseq
    %v133 = vshrl.u32 %v132, 7
    %v134 = vsub.s32 1, %v133
    %v135 = vrot.slane %v126, %v134
    %v136 = vlaneseq
    %v137 = vshrl.u32 %v136, 7
    %v138 = vsub.s32 2, %v137
    %v139 = vrot.slane %v126, %v138
    %v140 = vlaneseq
    %v141 = vshrl.u32 %v140, 7
    %v142 = vsub.s32 3, %v141
    %v143 = vrot.slane %v126, %v142
    %v148 = vld [vmem:[#allocation2] sm:$0xff]
    %v149 = vadd.f32 %v148, 0.0
    %150 = vmatprep.subr.mxu0 %v63
    %151 = vmatpush1.msra.mxu0 %v62
    %152 = vmatprep.subr.mxu0 %v67
    %153 = vmatpush1.msra.mxu0 %v66
    %154 = vmatprep.subr.mxu0 %v71
    %155 = vmatpush1.msra.mxu0 %v70
    %156 = vmatprep.subr.mxu0 %v75
    %157 = vmatpush1.msra.mxu0 %v74
    %158 = vmatprep.subr.mxu0 %v79
    %159 = vmatpush1.msra.mxu0 %v78
    %160 = vmatprep.subr.mxu0 %v83
    %161 = vmatpush1.msra.mxu0 %v82
    %162 = vmatprep.subr.mxu0 %v87
    %163 = vmatpush1.msra.mxu0 %v86
    %164 = vmatprep.subr.mxu0 %v91
    %165 = vmatpush1.msra.mxu0 %v90
    %166 = vmatprep.subr.mxu0 %v95
    %167 = vmatpush1.msra.mxu0 %v94
    %168 = vmatprep.subr.mxu0 %v99
    %169 = vmatpush1.msra.mxu0 %v98
    %170 = vmatprep.subr.mxu0 %v103
    %171 = vmatpush1.msra.mxu0 %v102
    %172 = vmatprep.subr.mxu0 %v107
    %173 = vmatpush1.msra.mxu0 %v106
    %174 = vmatprep.subr.mxu0 %v111
    %175 = vmatpush1.msra.mxu0 %v110
    %176 = vmatprep.subr.mxu0 %v115
    %177 = vmatpush1.msra.mxu0 %v114
    %178 = vmatprep.subr.mxu0 %v119
    %179 = vmatpush1.msra.mxu0 %v118
    %180 = vmatprep.subr.mxu0 %v123
    %181 = vmatpush1.msra.mxu0 %v122
    %182 = vmatprep.subr.mxu0 0.0
    %183 = vmatpush1.msra.mxu0 0.0
    %184 = vmatprep.subr.mxu0 0.0
    %185 = vmatpush1.msra.mxu0 0.0
    %186 = vmatprep.subr.mxu0 0.0
    %187 = vmatpush1.msra.mxu0 0.0
    %188 = vmatprep.subr.mxu0 0.0
    %189 = vmatpush1.msra.mxu0 0.0
    %190 = vmatprep.subr.mxu0 0.0
    %191 = vmatpush1.msra.mxu0 0.0
    %192 = vmatprep.subr.mxu0 0.0
    %193 = vmatpush1.msra.mxu0 0.0
    %194 = vmatprep.subr.mxu0 0.0
    %195 = vmatpush1.msra.mxu0 0.0
    %196 = vmatprep.subr.mxu0 0.0
    %197 = vmatpush1.msra.mxu0 0.0
    %198 = vmatprep.subr.mxu0 0.0
    %199 = vmatpush1.msra.mxu0 0.0
    %200 = vmatprep.subr.mxu0 0.0
    %201 = vmatpush1.msra.mxu0 0.0
    %202 = vmatprep.subr.mxu0 0.0
    %203 = vmatpush1.msra.mxu0 0.0
    %204 = vmatprep.subr.mxu0 0.0
    %205 = vmatpush1.msra.mxu0 0.0
    %206 = vmatprep.subr.mxu0 0.0
    %207 = vmatpush1.msra.mxu0 0.0
    %208 = vmatprep.subr.mxu0 0.0
    %209 = vmatpush1.msra.mxu0 0.0
    %210 = vmatprep.subr.mxu0 0.0
    %211 = vmatpush1.msra.mxu0 0.0
    %212 = vmatprep.subr.mxu0 0.0
    %213 = vmatpush1.msra.mxu0 0.0
    %214 = vmatprep.mubr.f32.mxu0 0.0
    %215 = vmatmul.mubr.f32.gmra.mrb[0].mxu0 %v149
    %v216 = vpop.f32.mrb[0].mxu0
    %v217 = vadd.f32 %v131, %v216
    %v218 = vpop.f32.mrb[0].mxu0
    %v219 = vadd.f32 %v135, %v218
    %220 = vdwg.mxu0
    %221 = vmatprep.subr.mxu0 %v65
    %222 = vmatpush1.msra.mxu0 %v64
    %223 = vmatprep.subr.mxu0 %v69
    %224 = vmatpush1.msra.mxu0 %v68
    %225 = vmatprep.subr.mxu0 %v73
    %226 = vmatpush1.msra.mxu0 %v72
    %227 = vmatprep.subr.mxu0 %v77
    %228 = vmatpush1.msra.mxu0 %v76
    %229 = vmatprep.subr.mxu0 %v81
    %230 = vmatpush1.msra.mxu0 %v80
    %231 = vmatprep.subr.mxu0 %v85
    %232 = vmatpush1.msra.mxu0 %v84
    %233 = vmatprep.subr.mxu0 %v89
    %234 = vmatpush1.msra.mxu0 %v88
    %235 = vmatprep.subr.mxu0 %v93
    %236 = vmatpush1.msra.mxu0 %v92
    %237 = vmatprep.subr.mxu0 %v97
    %238 = vmatpush1.msra.mxu0 %v96
    %239 = vmatprep.subr.mxu0 %v101
    %240 = vmatpush1.msra.mxu0 %v100
    %241 = vmatprep.subr.mxu0 %v105
    %242 = vmatpush1.msra.mxu0 %v104
    %243 = vmatprep.subr.mxu0 %v109
    %244 = vmatpush1.msra.mxu0 %v108
    %245 = vmatprep.subr.mxu0 %v113
    %246 = vmatpush1.msra.mxu0 %v112
    %247 = vmatprep.subr.mxu0 %v117
    %248 = vmatpush1.msra.mxu0 %v116
    %249 = vmatprep.subr.mxu0 %v121
    %250 = vmatpush1.msra.mxu0 %v120
    %251 = vmatprep.subr.mxu0 %v125
    %252 = vmatpush1.msra.mxu0 %v124
    %253 = vmatprep.subr.mxu0 0.0
    %254 = vmatpush1.msra.mxu0 0.0
    %255 = vmatprep.subr.mxu0 0.0
    %256 = vmatpush1.msra.mxu0 0.0
    %257 = vmatprep.subr.mxu0 0.0
    %258 = vmatpush1.msra.mxu0 0.0
    %259 = vmatprep.subr.mxu0 0.0
    %260 = vmatpush1.msra.mxu0 0.0
    %261 = vmatprep.subr.mxu0 0.0
    %262 = vmatpush1.msra.mxu0 0.0
    %263 = vmatprep.subr.mxu0 0.0
    %264 = vmatpush1.msra.mxu0 0.0
    %265 = vmatprep.subr.mxu0 0.0
    %266 = vmatpush1.msra.mxu0 0.0
    %267 = vmatprep.subr.mxu0 0.0
    %268 = vmatpush1.msra.mxu0 0.0
    %269 = vmatprep.subr.mxu0 0.0
    %270 = vmatpush1.msra.mxu0 0.0
    %271 = vmatprep.subr.mxu0 0.0
    %272 = vmatpush1.msra.mxu0 0.0
    %273 = vmatprep.subr.mxu0 0.0
    %274 = vmatpush1.msra.mxu0 0.0
    %275 = vmatprep.subr.mxu0 0.0
    %276 = vmatpush1.msra.mxu0 0.0
    %277 = vmatprep.subr.mxu0 0.0
    %278 = vmatpush1.msra.mxu0 0.0
    %279 = vmatprep.subr.mxu0 0.0
    %280 = vmatpush1.msra.mxu0 0.0
    %281 = vmatprep.subr.mxu0 0.0
    %282 = vmatpush1.msra.mxu0 0.0
    %283 = vmatprep.subr.mxu0 0.0
    %284 = vmatpush1.msra.mxu0 0.0
    %285 = vmatprep.mubr.f32.mxu0 0.0
    %286 = vmatmul.mubr.f32.gmra.mrb[0].mxu0 %v149
    %v287 = vpop.f32.mrb[0].mxu0
    %v288 = vadd.f32 %v139, %v287
    %v289 = vpop.f32.mrb[0].mxu0
    %v290 = vadd.f32 %v143, %v289
    %291 = vdwg.mxu0
    %v292 = vxor.u32 %v217, 2147483648
    %v293 = vmul.f32 %v292, 1.442695
    %v294 = vpow.pop %v293
    %v295 = vadd.f32 %v294, 1.0
    %v296 = vrcp.pop %v295
    %v297 = vmul.f32 1.0, %v296
    %v298 = vxor.u32 %v219, 2147483648
    %v299 = vmul.f32 %v298, 1.442695
    %v300 = vpow.pop %v299
    %v301 = vadd.f32 %v300, 1.0
    %v302 = vrcp.pop %v301
    %v303 = vmul.f32 1.0, %v302
    %v304 = vtanh.pop %v288
    %v305 = vxor.u32 %v290, 2147483648
    %v306 = vmul.f32 %v305, 1.442695
    %v307 = vpow.pop %v306
    %v308 = vadd.f32 %v307, 1.0
    %v309 = vrcp.pop %v308
    %v310 = vmul.f32 1.0, %v309
    %v311 = vmul.f32 %v303, 0.0
    %v312 = vmul.f32 %v297, %v304
    %v313 = vadd.f32 %v311, %v312
    %v314 = vtanh.pop %v313
    %v315 = vmul.f32 %v310, %v314
    %s316 = scalar_lea.vmem [#allocation2], 8
    %v317 = vld [vmem:[%s316] sm:$0xff]
    %v318 = vadd.f32 %v315, %v317
    %319 = vmatprep.subr.mxu0 %v63
    %320 = vmatpush1.msra.mxu0 %v62
    %321 = vmatprep.subr.mxu0 %v67
    %322 = vmatpush1.msra.mxu0 %v66
    %323 = vmatprep.subr.mxu0 %v71
    %324 = vmatpush1.msra.mxu0 %v70
    %325 = vmatprep.subr.mxu0 %v75
    %326 = vmatpush1.msra.mxu0 %v74
    %327 = vmatprep.subr.mxu0 %v79
    %328 = vmatpush1.msra.mxu0 %v78
    %329 = vmatprep.subr.mxu0 %v83
    %330 = vmatpush1.msra.mxu0 %v82
    %331 = vmatprep.subr.mxu0 %v87
    %332 = vmatpush1.msra.mxu0 %v86
    %333 = vmatprep.subr.mxu0 %v91
    %334 = vmatpush1.msra.mxu0 %v90
    %335 = vmatprep.subr.mxu0 %v95
    %336 = vmatpush1.msra.mxu0 %v94
    %337 = vmatprep.subr.mxu0 %v99
    %338 = vmatpush1.msra.mxu0 %v98
    %339 = vmatprep.subr.mxu0 %v103
    %340 = vmatpush1.msra.mxu0 %v102
    %341 = vmatprep.subr.mxu0 %v107
    %342 = vmatpush1.msra.mxu0 %v106
    %343 = vmatprep.subr.mxu0 %v111
    %344 = vmatpush1.msra.mxu0 %v110
    %345 = vmatprep.subr.mxu0 %v115
    %346 = vmatpush1.msra.mxu0 %v114
    %347 = vmatprep.subr.mxu0 %v119
    %348 = vmatpush1.msra.mxu0 %v118
    %349 = vmatprep.subr.mxu0 %v123
    %350 = vmatpush1.msra.mxu0 %v122
    %351 = vmatprep.subr.mxu0 0.0
    %352 = vmatpush1.msra.mxu0 0.0
    %353 = vmatprep.subr.mxu0 0.0
    %354 = vmatpush1.msra.mxu0 0.0
    %355 = vmatprep.subr.mxu0 0.0
    %356 = vmatpush1.msra.mxu0 0.0
    %357 = vmatprep.subr.mxu0 0.0
    %358 = vmatpush1.msra.mxu0 0.0
    %359 = vmatprep.subr.mxu0 0.0
    %360 = vmatpush1.msra.mxu0 0.0
    %361 = vmatprep.subr.mxu0 0.0
    %362 = vmatpush1.msra.mxu0 0.0
    %363 = vmatprep.subr.mxu0 0.0
    %364 = vmatpush1.msra.mxu0 0.0
    %365 = vmatprep.subr.mxu0 0.0
    %366 = vmatpush1.msra.mxu0 0.0
    %367 = vmatprep.subr.mxu0 0.0
    %368 = vmatpush1.msra.mxu0 0.0
    %369 = vmatprep.subr.mxu0 0.0
    %370 = vmatpush1.msra.mxu0 0.0
    %371 = vmatprep.subr.mxu0 0.0
    %372 = vmatpush1.msra.mxu0 0.0
    %373 = vmatprep.subr.mxu0 0.0
    %374 = vmatpush1.msra.mxu0 0.0
    %375 = vmatprep.subr.mxu0 0.0
    %376 = vmatpush1.msra.mxu0 0.0
    %377 = vmatprep.subr.mxu0 0.0
    %378 = vmatpush1.msra.mxu0 0.0
    %379 = vmatprep.subr.mxu0 0.0
    %380 = vmatpush1.msra.mxu0 0.0
    %381 = vmatprep.subr.mxu0 0.0
    %382 = vmatpush1.msra.mxu0 0.0
    %383 = vmatprep.mubr.f32.mxu0 0.0
    %384 = vmatmul.mubr.f32.gmra.mrb[0].mxu0 %v318
    %v385 = vpop.f32.mrb[0].mxu0
    %v386 = vadd.f32 %v131, %v385
    %v387 = vpop.f32.mrb[0].mxu0
    %v388 = vadd.f32 %v135, %v387
    %389 = vdwg.mxu0
    %390 = vmatprep.subr.mxu0 %v65
    %391 = vmatpush1.msra.mxu0 %v64
    %392 = vmatprep.subr.mxu0 %v69
    %393 = vmatpush1.msra.mxu0 %v68
    %394 = vmatprep.subr.mxu0 %v73
    %395 = vmatpush1.msra.mxu0 %v72
    %396 = vmatprep.subr.mxu0 %v77
    %397 = vmatpush1.msra.mxu0 %v76
    %398 = vmatprep.subr.mxu0 %v81
    %399 = vmatpush1.msra.mxu0 %v80
    %400 = vmatprep.subr.mxu0 %v85
    %401 = vmatpush1.msra.mxu0 %v84
    %402 = vmatprep.subr.mxu0 %v89
    %403 = vmatpush1.msra.mxu0 %v88
    %404 = vmatprep.subr.mxu0 %v93
    %405 = vmatpush1.msra.mxu0 %v92
    %406 = vmatprep.subr.mxu0 %v97
    %407 = vmatpush1.msra.mxu0 %v96
    %408 = vmatprep.subr.mxu0 %v101
    %409 = vmatpush1.msra.mxu0 %v100
    %410 = vmatprep.subr.mxu0 %v105
    %411 = vmatpush1.msra.mxu0 %v104
    %412 = vmatprep.subr.mxu0 %v109
    %413 = vmatpush1.msra.mxu0 %v108
    %414 = vmatprep.subr.mxu0 %v113
    %415 = vmatpush1.msra.mxu0 %v112
    %416 = vmatprep.subr.mxu0 %v117
    %417 = vmatpush1.msra.mxu0 %v116
    %418 = vmatprep.subr.mxu0 %v121
    %419 = vmatpush1.msra.mxu0 %v120
    %420 = vmatprep.subr.mxu0 %v125
    %421 = vmatpush1.msra.mxu0 %v124
    %422 = vmatprep.subr.mxu0 0.0
    %423 = vmatpush1.msra.mxu0 0.0
    %424 = vmatprep.subr.mxu0 0.0
    %425 = vmatpush1.msra.mxu0 0.0
    %426 = vmatprep.subr.mxu0 0.0
    %427 = vmatpush1.msra.mxu0 0.0
    %428 = vmatprep.subr.mxu0 0.0
    %429 = vmatpush1.msra.mxu0 0.0
    %430 = vmatprep.subr.mxu0 0.0
    %431 = vmatpush1.msra.mxu0 0.0
    %432 = vmatprep.subr.mxu0 0.0
    %433 = vmatpush1.msra.mxu0 0.0
    %434 = vmatprep.subr.mxu0 0.0
    %435 = vmatpush1.msra.mxu0 0.0
    %436 = vmatprep.subr.mxu0 0.0
    %437 = vmatpush1.msra.mxu0 0.0
    %438 = vmatprep.subr.mxu0 0.0
    %439 = vmatpush1.msra.mxu0 0.0
    %440 = vmatprep.subr.mxu0 0.0
    %441 = vmatpush1.msra.mxu0 0.0
    %442 = vmatprep.subr.mxu0 0.0
    %443 = vmatpush1.msra.mxu0 0.0
    %444 = vmatprep.subr.mxu0 0.0
    %445 = vmatpush1.msra.mxu0 0.0
    %446 = vmatprep.subr.mxu0 0.0
    %447 = vmatpush1.msra.mxu0 0.0
    %448 = vmatprep.subr.mxu0 0.0
    %449 = vmatpush1.msra.mxu0 0.0
    %450 = vmatprep.subr.mxu0 0.0
    %451 = vmatpush1.msra.mxu0 0.0
    %452 = vmatprep.subr.mxu0 0.0
    %453 = vmatpush1.msra.mxu0 0.0
    %454 = vmatprep.mubr.f32.mxu0 0.0
    %455 = vmatmul.mubr.f32.gmra.mrb[0].mxu0 %v318
    %v456 = vpop.f32.mrb[0].mxu0
    %v457 = vadd.f32 %v139, %v456
    %v458 = vpop.f32.mrb[0].mxu0
    %v459 = vadd.f32 %v143, %v458
    %460 = vdwg.mxu0
    %v461 = vxor.u32 %v386, 2147483648
    %v462 = vmul.f32 %v461, 1.442695
    %v463 = vpow.pop %v462
    %v464 = vadd.f32 %v463, 1.0
    %v465 = vrcp.pop %v464
    %v466 = vmul.f32 1.0, %v465
    %v467 = vxor.u32 %v388, 2147483648
    %v468 = vmul.f32 %v467, 1.442695
    %v469 = vpow.pop %v468
    %v470 = vadd.f32 %v469, 1.0
    %v471 = vrcp.pop %v470
    %v472 = vmul.f32 1.0, %v471
    %v473 = vtanh.pop %v457
    %v474 = vxor.u32 %v459, 2147483648
    %v475 = vmul.f32 %v474, 1.442695
    %v476 = vpow.pop %v475
    %v477 = vadd.f32 %v476, 1.0
    %v478 = vrcp.pop %v477
    %v479 = vmul.f32 1.0, %v478
    %v480 = vmul.f32 %v472, %v313
    %v481 = vmul.f32 %v466, %v473
    %v482 = vadd.f32 %v480, %v481
    %v483 = vtanh.pop %v482
    %v484 = vmul.f32 %v479, %v483
    %s485 = scalar_lea.vmem [#allocation2], 16
    %v486 = vld [vmem:[%s485] sm:$0xff]
    %v487 = vadd.f32 %v484, %v486
    %488 = vmatprep.subr.mxu0 %v63
    %489 = vmatpush1.msra.mxu0 %v62
    %490 = vmatprep.subr.mxu0 %v67
    %491 = vmatpush1.msra.mxu0 %v66
    %492 = vmatprep.subr.mxu0 %v71
    %493 = vmatpush1.msra.mxu0 %v70
    %494 = vmatprep.subr.mxu0 %v75
    %495 = vmatpush1.msra.mxu0 %v74
    %496 = vmatprep.subr.mxu0 %v79
    %497 = vmatpush1.msra.mxu0 %v78
    %498 = vmatprep.subr.mxu0 %v83
    %499 = vmatpush1.msra.mxu0 %v82
    %500 = vmatprep.subr.mxu0 %v87
    %501 = vmatpush1.msra.mxu0 %v86
    %502 = vmatprep.subr.mxu0 %v91
    %503 = vmatpush1.msra.mxu0 %v90
    %504 = vmatprep.subr.mxu0 %v95
    %505 = vmatpush1.msra.mxu0 %v94
    %506 = vmatprep.subr.mxu0 %v99
    %507 = vmatpush1.msra.mxu0 %v98
    %508 = vmatprep.subr.mxu0 %v103
    %509 = vmatpush1.msra.mxu0 %v102
    %510 = vmatprep.subr.mxu0 %v107
    %511 = vmatpush1.msra.mxu0 %v106
    %512 = vmatprep.subr.mxu0 %v111
    %513 = vmatpush1.msra.mxu0 %v110
    %514 = vmatprep.subr.mxu0 %v115
    %515 = vmatpush1.msra.mxu0 %v114
    %516 = vmatprep.subr.mxu0 %v119
    %517 = vmatpush1.msra.mxu0 %v118
    %518 = vmatprep.subr.mxu0 %v123
    %519 = vmatpush1.msra.mxu0 %v122
    %520 = vmatprep.subr.mxu0 0.0
    %521 = vmatpush1.msra.mxu0 0.0
    %522 = vmatprep.subr.mxu0 0.0
    %523 = vmatpush1.msra.mxu0 0.0
    %524 = vmatprep.subr.mxu0 0.0
    %525 = vmatpush1.msra.mxu0 0.0
    %526 = vmatprep.subr.mxu0 0.0
    %527 = vmatpush1.msra.mxu0 0.0
    %528 = vmatprep.subr.mxu0 0.0
    %529 = vmatpush1.msra.mxu0 0.0
    %530 = vmatprep.subr.mxu0 0.0
    %531 = vmatpush1.msra.mxu0 0.0
    %532 = vmatprep.subr.mxu0 0.0
    %533 = vmatpush1.msra.mxu0 0.0
    %534 = vmatprep.subr.mxu0 0.0
    %535 = vmatpush1.msra.mxu0 0.0
    %536 = vmatprep.subr.mxu0 0.0
    %537 = vmatpush1.msra.mxu0 0.0
    %538 = vmatprep.subr.mxu0 0.0
    %539 = vmatpush1.msra.mxu0 0.0
    %540 = vmatprep.subr.mxu0 0.0
    %541 = vmatpush1.msra.mxu0 0.0
    %542 = vmatprep.subr.mxu0 0.0
    %543 = vmatpush1.msra.mxu0 0.0
    %544 = vmatprep.subr.mxu0 0.0
    %545 = vmatpush1.msra.mxu0 0.0
    %546 = vmatprep.subr.mxu0 0.0
    %547 = vmatpush1.msra.mxu0 0.0
    %548 = vmatprep.subr.mxu0 0.0
    %549 = vmatpush1.msra.mxu0 0.0
    %550 = vmatprep.subr.mxu0 0.0
    %551 = vmatpush1.msra.mxu0 0.0
    %552 = vmatprep.mubr.f32.mxu0 0.0
    %553 = vmatmul.mubr.f32.gmra.mrb[0].mxu0 %v487
    %v554 = vpop.f32.mrb[0].mxu0
    %v555 = vadd.f32 %v131, %v554
    %v556 = vpop.f32.mrb[0].mxu0
    %v557 = vadd.f32 %v135, %v556
    %558 = vdwg.mxu0
    %559 = vmatprep.subr.mxu0 %v65
    %560 = vmatpush1.msra.mxu0 %v64
    %561 = vmatprep.subr.mxu0 %v69
    %562 = vmatpush1.msra.mxu0 %v68
    %563 = vmatprep.subr.mxu0 %v73
    %564 = vmatpush1.msra.mxu0 %v72
    %565 = vmatprep.subr.mxu0 %v77
    %566 = vmatpush1.msra.mxu0 %v76
    %567 = vmatprep.subr.mxu0 %v81
    %568 = vmatpush1.msra.mxu0 %v80
    %569 = vmatprep.subr.mxu0 %v85
    %570 = vmatpush1.msra.mxu0 %v84
    %571 = vmatprep.subr.mxu0 %v89
    %572 = vmatpush1.msra.mxu0 %v88
    %573 = vmatprep.subr.mxu0 %v93
    %574 = vmatpush1.msra.mxu0 %v92
    %575 = vmatprep.subr.mxu0 %v97
    %576 = vmatpush1.msra.mxu0 %v96
    %577 = vmatprep.subr.mxu0 %v101
    %578 = vmatpush1.msra.mxu0 %v100
    %579 = vmatprep.subr.mxu0 %v105
    %580 = vmatpush1.msra.mxu0 %v104
    %581 = vmatprep.subr.mxu0 %v109
    %582 = vmatpush1.msra.mxu0 %v108
    %583 = vmatprep.subr.mxu0 %v113
    %584 = vmatpush1.msra.mxu0 %v112
    %585 = vmatprep.subr.mxu0 %v117
    %586 = vmatpush1.msra.mxu0 %v116
    %587 = vmatprep.subr.mxu0 %v121
    %588 = vmatpush1.msra.mxu0 %v120
    %589 = vmatprep.subr.mxu0 %v125
    %590 = vmatpush1.msra.mxu0 %v124
    %591 = vmatprep.subr.mxu0 0.0
    %592 = vmatpush1.msra.mxu0 0.0
    %593 = vmatprep.subr.mxu0 0.0
    %594 = vmatpush1.msra.mxu0 0.0
    %595 = vmatprep.subr.mxu0 0.0
    %596 = vmatpush1.msra.mxu0 0.0
    %597 = vmatprep.subr.mxu0 0.0
    %598 = vmatpush1.msra.mxu0 0.0
    %599 = vmatprep.subr.mxu0 0.0
    %600 = vmatpush1.msra.mxu0 0.0
    %601 = vmatprep.subr.mxu0 0.0
    %602 = vmatpush1.msra.mxu0 0.0
    %603 = vmatprep.subr.mxu0 0.0
    %604 = vmatpush1.msra.mxu0 0.0
    %605 = vmatprep.subr.mxu0 0.0
    %606 = vmatpush1.msra.mxu0 0.0
    %607 = vmatprep.subr.mxu0 0.0
    %608 = vmatpush1.msra.mxu0 0.0
    %609 = vmatprep.subr.mxu0 0.0
    %610 = vmatpush1.msra.mxu0 0.0
    %611 = vmatprep.subr.mxu0 0.0
    %612 = vmatpush1.msra.mxu0 0.0
    %613 = vmatprep.subr.mxu0 0.0
    %614 = vmatpush1.msra.mxu0 0.0
    %615 = vmatprep.subr.mxu0 0.0
    %616 = vmatpush1.msra.mxu0 0.0
    %617 = vmatprep.subr.mxu0 0.0
    %618 = vmatpush1.msra.mxu0 0.0
    %619 = vmatprep.subr.mxu0 0.0
    %620 = vmatpush1.msra.mxu0 0.0
    %621 = vmatprep.subr.mxu0 0.0
    %622 = vmatpush1.msra.mxu0 0.0
    %623 = vmatprep.mubr.f32.mxu0 0.0
    %624 = vmatmul.mubr.f32.gmra.mrb[0].mxu0 %v487
    %v625 = vpop.f32.mrb[0].mxu0
    %v626 = vadd.f32 %v139, %v625
    %v627 = vpop.f32.mrb[0].mxu0
    %v628 = vadd.f32 %v143, %v627
    %629 = vdwg.mxu0
    %v630 = vxor.u32 %v555, 2147483648
    %v631 = vmul.f32 %v630, 1.442695
    %v632 = vpow.pop %v631
    %v633 = vadd.f32 %v632, 1.0
    %v634 = vrcp.pop %v633
    %v635 = vmul.f32 1.0, %v634
    %v636 = vxor.u32 %v557, 2147483648
    %v637 = vmul.f32 %v636, 1.442695
    %v638 = vpow.pop %v637
    %v639 = vadd.f32 %v638, 1.0
    %v640 = vrcp.pop %v639
    %v641 = vmul.f32 1.0, %v640
    %v642 = vtanh.pop %v626
    %v643 = vxor.u32 %v628, 2147483648
    %v644 = vmul.f32 %v643, 1.442695
    %v645 = vpow.pop %v644
    %v646 = vadd.f32 %v645, 1.0
    %v647 = vrcp.pop %v646
    %v648 = vmul.f32 1.0, %v647
    %v649 = vmul.f32 %v641, %v482
    %v650 = vmul.f32 %v635, %v642
    %v651 = vadd.f32 %v649, %v650
    %v652 = vtanh.pop %v651
    %v653 = vmul.f32 %v648, %v652
    %s654 = scalar_lea.vmem [#allocation2], 24
    %v655 = vld [vmem:[%s654] sm:$0xff]
    %v656 = vadd.f32 %v653, %v655
    %657 = vmatprep.subr.mxu0 %v63
    %658 = vmatpush1.msra.mxu0 %v62
    %659 = vmatprep.subr.mxu0 %v67
    %660 = vmatpush1.msra.mxu0 %v66
    %661 = vmatprep.subr.mxu0 %v71
    %662 = vmatpush1.msra.mxu0 %v70
    %663 = vmatprep.subr.mxu0 %v75
    %664 = vmatpush1.msra.mxu0 %v74
    %665 = vmatprep.subr.mxu0 %v79
    %666 = vmatpush1.msra.mxu0 %v78
    %667 = vmatprep.subr.mxu0 %v83
    %668 = vmatpush1.msra.mxu0 %v82
    %669 = vmatprep.subr.mxu0 %v87
    %670 = vmatpush1.msra.mxu0 %v86
    %671 = vmatprep.subr.mxu0 %v91
    %672 = vmatpush1.msra.mxu0 %v90
    %673 = vmatprep.subr.mxu0 %v95
    %674 = vmatpush1.msra.mxu0 %v94
    %675 = vmatprep.subr.mxu0 %v99
    %676 = vmatpush1.msra.mxu0 %v98
    %677 = vmatprep.subr.mxu0 %v103
    %678 = vmatpush1.msra.mxu0 %v102
    %679 = vmatprep.subr.mxu0 %v107
    %680 = vmatpush1.msra.mxu0 %v106
    %681 = vmatprep.subr.mxu0 %v111
    %682 = vmatpush1.msra.mxu0 %v110
    %683 = vmatprep.subr.mxu0 %v115
    %684 = vmatpush1.msra.mxu0 %v114
    %685 = vmatprep.subr.mxu0 %v119
    %686 = vmatpush1.msra.mxu0 %v118
    %687 = vmatprep.subr.mxu0 %v123
    %688 = vmatpush1.msra.mxu0 %v122
    %689 = vmatprep.subr.mxu0 0.0
    %690 = vmatpush1.msra.mxu0 0.0
    %691 = vmatprep.subr.mxu0 0.0
    %692 = vmatpush1.msra.mxu0 0.0
    %693 = vmatprep.subr.mxu0 0.0
    %694 = vmatpush1.msra.mxu0 0.0
    %695 = vmatprep.subr.mxu0 0.0
    %696 = vmatpush1.msra.mxu0 0.0
    %697 = vmatprep.subr.mxu0 0.0
    %698 = vmatpush1.msra.mxu0 0.0
    %699 = vmatprep.subr.mxu0 0.0
    %700 = vmatpush1.msra.mxu0 0.0
    %701 = vmatprep.subr.mxu0 0.0
    %702 = vmatpush1.msra.mxu0 0.0
    %703 = vmatprep.subr.mxu0 0.0
    %704 = vmatpush1.msra.mxu0 0.0
    %705 = vmatprep.subr.mxu0 0.0
    %706 = vmatpush1.msra.mxu0 0.0
    %707 = vmatprep.subr.mxu0 0.0
    %708 = vmatpush1.msra.mxu0 0.0
    %709 = vmatprep.subr.mxu0 0.0
    %710 = vmatpush1.msra.mxu0 0.0
    %711 = vmatprep.subr.mxu0 0.0
    %712 = vmatpush1.msra.mxu0 0.0
    %713 = vmatprep.subr.mxu0 0.0
    %714 = vmatpush1.msra.mxu0 0.0
    %715 = vmatprep.subr.mxu0 0.0
    %716 = vmatpush1.msra.mxu0 0.0
    %717 = vmatprep.subr.mxu0 0.0
    %718 = vmatpush1.msra.mxu0 0.0
    %719 = vmatprep.subr.mxu0 0.0
    %720 = vmatpush1.msra.mxu0 0.0
    %721 = vmatprep.mubr.f32.mxu0 0.0
    %722 = vmatmul.mubr.f32.gmra.mrb[0].mxu0 %v656
    %v723 = vpop.f32.mrb[0].mxu0
    %v724 = vadd.f32 %v131, %v723
    %v725 = vpop.f32.mrb[0].mxu0
    %v726 = vadd.f32 %v135, %v725
    %727 = vdwg.mxu0
    %728 = vmatprep.subr.mxu0 %v65
    %729 = vmatpush1.msra.mxu0 %v64
    %730 = vmatprep.subr.mxu0 %v69
    %731 = vmatpush1.msra.mxu0 %v68
    %732 = vmatprep.subr.mxu0 %v73
    %733 = vmatpush1.msra.mxu0 %v72
    %734 = vmatprep.subr.mxu0 %v77
    %735 = vmatpush1.msra.mxu0 %v76
    %736 = vmatprep.subr.mxu0 %v81
    %737 = vmatpush1.msra.mxu0 %v80
    %738 = vmatprep.subr.mxu0 %v85
    %739 = vmatpush1.msra.mxu0 %v84
    %740 = vmatprep.subr.mxu0 %v89
    %741 = vmatpush1.msra.mxu0 %v88
    %742 = vmatprep.subr.mxu0 %v93
    %743 = vmatpush1.msra.mxu0 %v92
    %744 = vmatprep.subr.mxu0 %v97
    %745 = vmatpush1.msra.mxu0 %v96
    %746 = vmatprep.subr.mxu0 %v101
    %747 = vmatpush1.msra.mxu0 %v100
    %748 = vmatprep.subr.mxu0 %v105
    %749 = vmatpush1.msra.mxu0 %v104
    %750 = vmatprep.subr.mxu0 %v109
    %751 = vmatpush1.msra.mxu0 %v108
    %752 = vmatprep.subr.mxu0 %v113
    %753 = vmatpush1.msra.mxu0 %v112
    %754 = vmatprep.subr.mxu0 %v117
    %755 = vmatpush1.msra.mxu0 %v116
    %756 = vmatprep.subr.mxu0 %v121
    %757 = vmatpush1.msra.mxu0 %v120
    %758 = vmatprep.subr.mxu0 %v125
    %759 = vmatpush1.msra.mxu0 %v124
    %760 = vmatprep.subr.mxu0 0.0
    %761 = vmatpush1.msra.mxu0 0.0
    %762 = vmatprep.subr.mxu0 0.0
    %763 = vmatpush1.msra.mxu0 0.0
    %764 = vmatprep.subr.mxu0 0.0
    %765 = vmatpush1.msra.mxu0 0.0
    %766 = vmatprep.subr.mxu0 0.0
    %767 = vmatpush1.msra.mxu0 0.0
    %768 = vmatprep.subr.mxu0 0.0
    %769 = vmatpush1.msra.mxu0 0.0
    %770 = vmatprep.subr.mxu0 0.0
    %771 = vmatpush1.msra.mxu0 0.0
    %772 = vmatprep.subr.mxu0 0.0
    %773 = vmatpush1.msra.mxu0 0.0
    %774 = vmatprep.subr.mxu0 0.0
    %775 = vmatpush1.msra.mxu0 0.0
    %776 = vmatprep.subr.mxu0 0.0
    %777 = vmatpush1.msra.mxu0 0.0
    %778 = vmatprep.subr.mxu0 0.0
    %779 = vmatpush1.msra.mxu0 0.0
    %780 = vmatprep.subr.mxu0 0.0
    %781 = vmatpush1.msra.mxu0 0.0
    %782 = vmatprep.subr.mxu0 0.0
    %783 = vmatpush1.msra.mxu0 0.0
    %784 = vmatprep.subr.mxu0 0.0
    %785 = vmatpush1.msra.mxu0 0.0
    %786 = vmatprep.subr.mxu0 0.0
    %787 = vmatpush1.msra.mxu0 0.0
    %788 = vmatprep.subr.mxu0 0.0
    %789 = vmatpush1.msra.mxu0 0.0
    %790 = vmatprep.subr.mxu0 0.0
    %791 = vmatpush1.msra.mxu0 0.0
    %792 = vmatprep.mubr.f32.mxu0 0.0
    %793 = vmatmul.mubr.f32.gmra.mrb[0].mxu0 %v656
    %v794 = vpop.f32.mrb[0].mxu0
    %v795 = vadd.f32 %v139, %v794
    %v796 = vpop.f32.mrb[0].mxu0
    %v797 = vadd.f32 %v143, %v796
    %798 = vdwg.mxu0
    %v799 = vxor.u32 %v724, 2147483648
    %v800 = vmul.f32 %v799, 1.442695
    %v801 = vpow.pop %v800
    %v802 = vadd.f32 %v801, 1.0
    %v803 = vrcp.pop %v802
    %v804 = vmul.f32 1.0, %v803
    %v805 = vxor.u32 %v726, 2147483648
    %v806 = vmul.f32 %v805, 1.442695
    %v807 = vpow.pop %v806
    %v808 = vadd.f32 %v807, 1.0
    %v809 = vrcp.pop %v808
    %v810 = vmul.f32 1.0, %v809
    %v811 = vtanh.pop %v795
    %v812 = vxor.u32 %v797, 2147483648
    %v813 = vmul.f32 %v812, 1.442695
    %v814 = vpow.pop %v813
    %v815 = vadd.f32 %v814, 1.0
    %v816 = vrcp.pop %v815
    %v817 = vmul.f32 1.0, %v816
    %v818 = vmul.f32 %v810, %v651
    %v819 = vmul.f32 %v804, %v811
    %v820 = vadd.f32 %v818, %v819
    %v821 = vtanh.pop %v820
    %v822 = vmul.f32 %v817, %v821
    %s823 = scalar_lea.vmem [#allocation2], 32
    %v824 = vld [vmem:[%s823] sm:$0xff]
    %v825 = vadd.f32 %v822, %v824
    %826 = vmatprep.subr.mxu0 %v63
    %827 = vmatpush1.msra.mxu0 %v62
    %828 = vmatprep.subr.mxu0 %v67
    %829 = vmatpush1.msra.mxu0 %v66
    %830 = vmatprep.subr.mxu0 %v71
    %831 = vmatpush1.msra.mxu0 %v70
    %832 = vmatprep.subr.mxu0 %v75
    %833 = vmatpush1.msra.mxu0 %v74
    %834 = vmatprep.subr.mxu0 %v79
    %835 = vmatpush1.msra.mxu0 %v78
    %836 = vmatprep.subr.mxu0 %v83
    %837 = vmatpush1.msra.mxu0 %v82
    %838 = vmatprep.subr.mxu0 %v87
    %839 = vmatpush1.msra.mxu0 %v86
    %840 = vmatprep.subr.mxu0 %v91
    %841 = vmatpush1.msra.mxu0 %v90
    %842 = vmatprep.subr.mxu0 %v95
    %843 = vmatpush1.msra.mxu0 %v94
    %844 = vmatprep.subr.mxu0 %v99
    %845 = vmatpush1.msra.mxu0 %v98
    %846 = vmatprep.subr.mxu0 %v103
    %847 = vmatpush1.msra.mxu0 %v102
    %848 = vmatprep.subr.mxu0 %v107
    %849 = vmatpush1.msra.mxu0 %v106
    %850 = vmatprep.subr.mxu0 %v111
    %851 = vmatpush1.msra.mxu0 %v110
    %852 = vmatprep.subr.mxu0 %v115
    %853 = vmatpush1.msra.mxu0 %v114
    %854 = vmatprep.subr.mxu0 %v119
    %855 = vmatpush1.msra.mxu0 %v118
    %856 = vmatprep.subr.mxu0 %v123
    %857 = vmatpush1.msra.mxu0 %v122
    %858 = vmatprep.subr.mxu0 0.0
    %859 = vmatpush1.msra.mxu0 0.0
    %860 = vmatprep.subr.mxu0 0.0
    %861 = vmatpush1.msra.mxu0 0.0
    %862 = vmatprep.subr.mxu0 0.0
    %863 = vmatpush1.msra.mxu0 0.0
    %864 = vmatprep.subr.mxu0 0.0
    %865 = vmatpush1.msra.mxu0 0.0
    %866 = vmatprep.subr.mxu0 0.0
    %867 = vmatpush1.msra.mxu0 0.0
    %868 = vmatprep.subr.mxu0 0.0
    %869 = vmatpush1.msra.mxu0 0.0
    %870 = vmatprep.subr.mxu0 0.0
    %871 = vmatpush1.msra.mxu0 0.0
    %872 = vmatprep.subr.mxu0 0.0
    %873 = vmatpush1.msra.mxu0 0.0
    %874 = vmatprep.subr.mxu0 0.0
    %875 = vmatpush1.msra.mxu0 0.0
    %876 = vmatprep.subr.mxu0 0.0
    %877 = vmatpush1.msra.mxu0 0.0
    %878 = vmatprep.subr.mxu0 0.0
    %879 = vmatpush1.msra.mxu0 0.0
    %880 = vmatprep.subr.mxu0 0.0
    %881 = vmatpush1.msra.mxu0 0.0
    %882 = vmatprep.subr.mxu0 0.0
    %883 = vmatpush1.msra.mxu0 0.0
    %884 = vmatprep.subr.mxu0 0.0
    %885 = vmatpush1.msra.mxu0 0.0
    %886 = vmatprep.subr.mxu0 0.0
    %887 = vmatpush1.msra.mxu0 0.0
    %888 = vmatprep.subr.mxu0 0.0
    %889 = vmatpush1.msra.mxu0 0.0
    %890 = vmatprep.mubr.f32.mxu0 0.0
    %891 = vmatmul.mubr.f32.gmra.mrb[0].mxu0 %v825
    %v892 = vpop.f32.mrb[0].mxu0
    %v893 = vadd.f32 %v131, %v892
    %v894 = vpop.f32.mrb[0].mxu0
    %v895 = vadd.f32 %v135, %v894
    %896 = vdwg.mxu0
    %897 = vmatprep.subr.mxu0 %v65
    %898 = vmatpush1.msra.mxu0 %v64
    %899 = vmatprep.subr.mxu0 %v69
    %900 = vmatpush1.msra.mxu0 %v68
    %901 = vmatprep.subr.mxu0 %v73
    %902 = vmatpush1.msra.mxu0 %v72
    %903 = vmatprep.subr.mxu0 %v77
    %904 = vmatpush1.msra.mxu0 %v76
    %905 = vmatprep.subr.mxu0 %v81
    %906 = vmatpush1.msra.mxu0 %v80
    %907 = vmatprep.subr.mxu0 %v85
    %908 = vmatpush1.msra.mxu0 %v84
    %909 = vmatprep.subr.mxu0 %v89
    %910 = vmatpush1.msra.mxu0 %v88
    %911 = vmatprep.subr.mxu0 %v93
    %912 = vmatpush1.msra.mxu0 %v92
    %913 = vmatprep.subr.mxu0 %v97
    %914 = vmatpush1.msra.mxu0 %v96
    %915 = vmatprep.subr.mxu0 %v101
    %916 = vmatpush1.msra.mxu0 %v100
    %917 = vmatprep.subr.mxu0 %v105
    %918 = vmatpush1.msra.mxu0 %v104
    %919 = vmatprep.subr.mxu0 %v109
    %920 = vmatpush1.msra.mxu0 %v108
    %921 = vmatprep.subr.mxu0 %v113
    %922 = vmatpush1.msra.mxu0 %v112
    %923 = vmatprep.subr.mxu0 %v117
    %924 = vmatpush1.msra.mxu0 %v116
    %925 = vmatprep.subr.mxu0 %v121
    %926 = vmatpush1.msra.mxu0 %v120
    %927 = vmatprep.subr.mxu0 %v125
    %928 = vmatpush1.msra.mxu0 %v124
    %929 = vmatprep.subr.mxu0 0.0
    %930 = vmatpush1.msra.mxu0 0.0
    %931 = vmatprep.subr.mxu0 0.0
    %932 = vmatpush1.msra.mxu0 0.0
    %933 = vmatprep.subr.mxu0 0.0
    %934 = vmatpush1.msra.mxu0 0.0
    %935 = vmatprep.subr.mxu0 0.0
    %936 = vmatpush1.msra.mxu0 0.0
    %937 = vmatprep.subr.mxu0 0.0
    %938 = vmatpush1.msra.mxu0 0.0
    %939 = vmatprep.subr.mxu0 0.0
    %940 = vmatpush1.msra.mxu0 0.0
    %941 = vmatprep.subr.mxu0 0.0
    %942 = vmatpush1.msra.mxu0 0.0
    %943 = vmatprep.subr.mxu0 0.0
    %944 = vmatpush1.msra.mxu0 0.0
    %945 = vmatprep.subr.mxu0 0.0
    %946 = vmatpush1.msra.mxu0 0.0
    %947 = vmatprep.subr.mxu0 0.0
    %948 = vmatpush1.msra.mxu0 0.0
    %949 = vmatprep.subr.mxu0 0.0
    %950 = vmatpush1.msra.mxu0 0.0
    %951 = vmatprep.subr.mxu0 0.0
    %952 = vmatpush1.msra.mxu0 0.0
    %953 = vmatprep.subr.mxu0 0.0
    %954 = vmatpush1.msra.mxu0 0.0
    %955 = vmatprep.subr.mxu0 0.0
    %956 = vmatpush1.msra.mxu0 0.0
    %957 = vmatprep.subr.mxu0 0.0
    %958 = vmatpush1.msra.mxu0 0.0
    %959 = vmatprep.subr.mxu0 0.0
    %960 = vmatpush1.msra.mxu0 0.0
    %961 = vmatprep.mubr.f32.mxu0 0.0
    %962 = vmatmul.mubr.f32.gmra.mrb[0].mxu0 %v825
    %v963 = vpop.f32.mrb[0].mxu0
    %v964 = vadd.f32 %v139, %v963
    %v965 = vpop.f32.mrb[0].mxu0
    %v966 = vadd.f32 %v143, %v965
    %967 = vdwg.mxu0
    %v968 = vxor.u32 %v893, 2147483648
    %v969 = vmul.f32 %v968, 1.442695
    %v970 = vpow.pop %v969
    %v971 = vadd.f32 %v970, 1.0
    %v972 = vrcp.pop %v971
    %v973 = vmul.f32 1.0, %v972
    %v974 = vxor.u32 %v895, 2147483648
    %v975 = vmul.f32 %v974, 1.442695
    %v976 = vpow.pop %v975
    %v977 = vadd.f32 %v976, 1.0
    %v978 = vrcp.pop %v977
    %v979 = vmul.f32 1.0, %v978
    %v980 = vtanh.pop %v964
    %v981 = vxor.u32 %v966, 2147483648
    %v982 = vmul.f32 %v981, 1.442695
    %v983 = vpow.pop %v982
    %v984 = vadd.f32 %v983, 1.0
    %v985 = vrcp.pop %v984
    %v986 = vmul.f32 1.0, %v985
    %v987 = vmul.f32 %v979, %v820
    %v988 = vmul.f32 %v973, %v980
    %v989 = vadd.f32 %v987, %v988
    %v990 = vtanh.pop %v989
    %v991 = vmul.f32 %v986, %v990
    %s992 = scalar_lea.vmem [#allocation2], 40
    %v993 = vld [vmem:[%s992] sm:$0xff]
    %v994 = vadd.f32 %v991, %v993
    %995 = vmatprep.subr.mxu0 %v63
    %996 = vmatpush1.msra.mxu0 %v62
    %997 = vmatprep.subr.mxu0 %v67
    %998 = vmatpush1.msra.mxu0 %v66
    %999 = vmatprep.subr.mxu0 %v71
    %1000 = vmatpush1.msra.mxu0 %v70
    %1001 = vmatprep.subr.mxu0 %v75
    %1002 = vmatpush1.msra.mxu0 %v74
    %1003 = vmatprep.subr.mxu0 %v79
    %1004 = vmatpush1.msra.mxu0 %v78
    %1005 = vmatprep.subr.mxu0 %v83
    %1006 = vmatpush1.msra.mxu0 %v82
    %1007 = vmatprep.subr.mxu0 %v87
    %1008 = vmatpush1.msra.mxu0 %v86
    %1009 = vmatprep.subr.mxu0 %v91
    %1010 = vmatpush1.msra.mxu0 %v90
    %1011 = vmatprep.subr.mxu0 %v95
    %1012 = vmatpush1.msra.mxu0 %v94
    %1013 = vmatprep.subr.mxu0 %v99
    %1014 = vmatpush1.msra.mxu0 %v98
    %1015 = vmatprep.subr.mxu0 %v103
    %1016 = vmatpush1.msra.mxu0 %v102
    %1017 = vmatprep.subr.mxu0 %v107
    %1018 = vmatpush1.msra.mxu0 %v106
    %1019 = vmatprep.subr.mxu0 %v111
    %1020 = vmatpush1.msra.mxu0 %v110
    %1021 = vmatprep.subr.mxu0 %v115
    %1022 = vmatpush1.msra.mxu0 %v114
    %1023 = vmatprep.subr.mxu0 %v119
    %1024 = vmatpush1.msra.mxu0 %v118
    %1025 = vmatprep.subr.mxu0 %v123
    %1026 = vmatpush1.msra.mxu0 %v122
    %1027 = vmatprep.subr.mxu0 0.0
    %1028 = vmatpush1.msra.mxu0 0.0
    %1029 = vmatprep.subr.mxu0 0.0
    %1030 = vmatpush1.msra.mxu0 0.0
    %1031 = vmatprep.subr.mxu0 0.0
    %1032 = vmatpush1.msra.mxu0 0.0
    %1033 = vmatprep.subr.mxu0 0.0
    %1034 = vmatpush1.msra.mxu0 0.0
    %1035 = vmatprep.subr.mxu0 0.0
    %1036 = vmatpush1.msra.mxu0 0.0
    %1037 = vmatprep.subr.mxu0 0.0
    %1038 = vmatpush1.msra.mxu0 0.0
    %1039 = vmatprep.subr.mxu0 0.0
    %1040 = vmatpush1.msra.mxu0 0.0
    %1041 = vmatprep.subr.mxu0 0.0
    %1042 = vmatpush1.msra.mxu0 0.0
    %1043 = vmatprep.subr.mxu0 0.0
    %1044 = vmatpush1.msra.mxu0 0.0
    %1045 = vmatprep.subr.mxu0 0.0
    %1046 = vmatpush1.msra.mxu0 0.0
    %1047 = vmatprep.subr.mxu0 0.0
    %1048 = vmatpush1.msra.mxu0 0.0
    %1049 = vmatprep.subr.mxu0 0.0
    %1050 = vmatpush1.msra.mxu0 0.0
    %1051 = vmatprep.subr.mxu0 0.0
    %1052 = vmatpush1.msra.mxu0 0.0
    %1053 = vmatprep.subr.mxu0 0.0
    %1054 = vmatpush1.msra.mxu0 0.0
    %1055 = vmatprep.subr.mxu0 0.0
    %1056 = vmatpush1.msra.mxu0 0.0
    %1057 = vmatprep.subr.mxu0 0.0
    %1058 = vmatpush1.msra.mxu0 0.0
    %1059 = vmatprep.mubr.f32.mxu0 0.0
    %1060 = vmatmul.mubr.f32.gmra.mrb[0].mxu0 %v994
    %v1061 = vpop.f32.mrb[0].mxu0
    %v1062 = vadd.f32 %v131, %v1061
    %v1063 = vpop.f32.mrb[0].mxu0
    %v1064 = vadd.f32 %v135, %v1063
    %1065 = vdwg.mxu0
    %1066 = vmatprep.subr.mxu0 %v65
    %1067 = vmatpush1.msra.mxu0 %v64
    %1068 = vmatprep.subr.mxu0 %v69
    %1069 = vmatpush1.msra.mxu0 %v68
    %1070 = vmatprep.subr.mxu0 %v73
    %1071 = vmatpush1.msra.mxu0 %v72
    %1072 = vmatprep.subr.mxu0 %v77
    %1073 = vmatpush1.msra.mxu0 %v76
    %1074 = vmatprep.subr.mxu0 %v81
    %1075 = vmatpush1.msra.mxu0 %v80
    %1076 = vmatprep.subr.mxu0 %v85
    %1077 = vmatpush1.msra.mxu0 %v84
    %1078 = vmatprep.subr.mxu0 %v89
    %1079 = vmatpush1.msra.mxu0 %v88
    %1080 = vmatprep.subr.mxu0 %v93
    %1081 = vmatpush1.msra.mxu0 %v92
    %1082 = vmatprep.subr.mxu0 %v97
    %1083 = vmatpush1.msra.mxu0 %v96
    %1084 = vmatprep.subr.mxu0 %v101
    %1085 = vmatpush1.msra.mxu0 %v100
    %1086 = vmatprep.subr.mxu0 %v105
    %1087 = vmatpush1.msra.mxu0 %v104
    %1088 = vmatprep.subr.mxu0 %v109
    %1089 = vmatpush1.msra.mxu0 %v108
    %1090 = vmatprep.subr.mxu0 %v113
    %1091 = vmatpush1.msra.mxu0 %v112
    %1092 = vmatprep.subr.mxu0 %v117
    %1093 = vmatpush1.msra.mxu0 %v116
    %1094 = vmatprep.subr.mxu0 %v121
    %1095 = vmatpush1.msra.mxu0 %v120
    %1096 = vmatprep.subr.mxu0 %v125
    %1097 = vmatpush1.msra.mxu0 %v124
    %1098 = vmatprep.subr.mxu0 0.0
    %1099 = vmatpush1.msra.mxu0 0.0
    %1100 = vmatprep.subr.mxu0 0.0
    %1101 = vmatpush1.msra.mxu0 0.0
    %1102 = vmatprep.subr.mxu0 0.0
    %1103 = vmatpush1.msra.mxu0 0.0
    %1104 = vmatprep.subr.mxu0 0.0
    %1105 = vmatpush1.msra.mxu0 0.0
    %1106 = vmatprep.subr.mxu0 0.0
    %1107 = vmatpush1.msra.mxu0 0.0
    %1108 = vmatprep.subr.mxu0 0.0
    %1109 = vmatpush1.msra.mxu0 0.0
    %1110 = vmatprep.subr.mxu0 0.0
    %1111 = vmatpush1.msra.mxu0 0.0
    %1112 = vmatprep.subr.mxu0 0.0
    %1113 = vmatpush1.msra.mxu0 0.0
    %1114 = vmatprep.subr.mxu0 0.0
    %1115 = vmatpush1.msra.mxu0 0.0
    %1116 = vmatprep.subr.mxu0 0.0
    %1117 = vmatpush1.msra.mxu0 0.0
    %1118 = vmatprep.subr.mxu0 0.0
    %1119 = vmatpush1.msra.mxu0 0.0
    %1120 = vmatprep.subr.mxu0 0.0
    %1121 = vmatpush1.msra.mxu0 0.0
    %1122 = vmatprep.subr.mxu0 0.0
    %1123 = vmatpush1.msra.mxu0 0.0
    %1124 = vmatprep.subr.mxu0 0.0
    %1125 = vmatpush1.msra.mxu0 0.0
    %1126 = vmatprep.subr.mxu0 0.0
    %1127 = vmatpush1.msra.mxu0 0.0
    %1128 = vmatprep.subr.mxu0 0.0
    %1129 = vmatpush1.msra.mxu0 0.0
    %1130 = vmatprep.mubr.f32.mxu0 0.0
    %1131 = vmatmul.mubr.f32.gmra.mrb[0].mxu0 %v994
    %v1132 = vpop.f32.mrb[0].mxu0
    %v1133 = vadd.f32 %v139, %v1132
    %v1134 = vpop.f32.mrb[0].mxu0
    %v1135 = vadd.f32 %v143, %v1134
    %1136 = vdwg.mxu0
    %v1137 = vxor.u32 %v1062, 2147483648
    %v1138 = vmul.f32 %v1137, 1.442695
    %v1139 = vpow.pop %v1138
    %v1140 = vadd.f32 %v1139, 1.0
    %v1141 = vrcp.pop %v1140
    %v1142 = vmul.f32 1.0, %v1141
    %v1143 = vxor.u32 %v1064, 2147483648
    %v1144 = vmul.f32 %v1143, 1.442695
    %v1145 = vpow.pop %v1144
    %v1146 = vadd.f32 %v1145, 1.0
    %v1147 = vrcp.pop %v1146
    %v1148 = vmul.f32 1.0, %v1147
    %v1149 = vtanh.pop %v1133
    %v1150 = vxor.u32 %v1135, 2147483648
    %v1151 = vmul.f32 %v1150, 1.442695
    %v1152 = vpow.pop %v1151
    %v1153 = vadd.f32 %v1152, 1.0
    %v1154 = vrcp.pop %v1153
    %v1155 = vmul.f32 1.0, %v1154
    %v1156 = vmul.f32 %v1148, %v989
    %v1157 = vmul.f32 %v1142, %v1149
    %v1158 = vadd.f32 %v1156, %v1157
    %v1159 = vtanh.pop %v1158
    %v1160 = vmul.f32 %v1155, %v1159
    %s1161 = scalar_lea.vmem [#allocation2], 48
    %v1162 = vld [vmem:[%s1161] sm:$0xff]
    %v1163 = vadd.f32 %v1160, %v1162
    %1164 = vmatprep.subr.mxu0 %v63
    %1165 = vmatpush1.msra.mxu0 %v62
    %1166 = vmatprep.subr.mxu0 %v67
    %1167 = vmatpush1.msra.mxu0 %v66
    %1168 = vmatprep.subr.mxu0 %v71
    %1169 = vmatpush1.msra.mxu0 %v70
    %1170 = vmatprep.subr.mxu0 %v75
    %1171 = vmatpush1.msra.mxu0 %v74
    %1172 = vmatprep.subr.mxu0 %v79
    %1173 = vmatpush1.msra.mxu0 %v78
    %1174 = vmatprep.subr.mxu0 %v83
    %1175 = vmatpush1.msra.mxu0 %v82
    %1176 = vmatprep.subr.mxu0 %v87
    %1177 = vmatpush1.msra.mxu0 %v86
    %1178 = vmatprep.subr.mxu0 %v91
    %1179 = vmatpush1.msra.mxu0 %v90
    %1180 = vmatprep.subr.mxu0 %v95
    %1181 = vmatpush1.msra.mxu0 %v94
    %1182 = vmatprep.subr.mxu0 %v99
    %1183 = vmatpush1.msra.mxu0 %v98
    %1184 = vmatprep.subr.mxu0 %v103
    %1185 = vmatpush1.msra.mxu0 %v102
    %1186 = vmatprep.subr.mxu0 %v107
    %1187 = vmatpush1.msra.mxu0 %v106
    %1188 = vmatprep.subr.mxu0 %v111
    %1189 = vmatpush1.msra.mxu0 %v110
    %1190 = vmatprep.subr.mxu0 %v115
    %1191 = vmatpush1.msra.mxu0 %v114
    %1192 = vmatprep.subr.mxu0 %v119
    %1193 = vmatpush1.msra.mxu0 %v118
    %1194 = vmatprep.subr.mxu0 %v123
    %1195 = vmatpush1.msra.mxu0 %v122
    %1196 = vmatprep.subr.mxu0 0.0
    %1197 = vmatpush1.msra.mxu0 0.0
    %1198 = vmatprep.subr.mxu0 0.0
    %1199 = vmatpush1.msra.mxu0 0.0
    %1200 = vmatprep.subr.mxu0 0.0
    %1201 = vmatpush1.msra.mxu0 0.0
    %1202 = vmatprep.subr.mxu0 0.0
    %1203 = vmatpush1.msra.mxu0 0.0
    %1204 = vmatprep.subr.mxu0 0.0
    %1205 = vmatpush1.msra.mxu0 0.0
    %1206 = vmatprep.subr.mxu0 0.0
    %1207 = vmatpush1.msra.mxu0 0.0
    %1208 = vmatprep.subr.mxu0 0.0
    %1209 = vmatpush1.msra.mxu0 0.0
    %1210 = vmatprep.subr.mxu0 0.0
    %1211 = vmatpush1.msra.mxu0 0.0
    %1212 = vmatprep.subr.mxu0 0.0
    %1213 = vmatpush1.msra.mxu0 0.0
    %1214 = vmatprep.subr.mxu0 0.0
    %1215 = vmatpush1.msra.mxu0 0.0
    %1216 = vmatprep.subr.mxu0 0.0
    %1217 = vmatpush1.msra.mxu0 0.0
    %1218 = vmatprep.subr.mxu0 0.0
    %1219 = vmatpush1.msra.mxu0 0.0
    %1220 = vmatprep.subr.mxu0 0.0
    %1221 = vmatpush1.msra.mxu0 0.0
    %1222 = vmatprep.subr.mxu0 0.0
    %1223 = vmatpush1.msra.mxu0 0.0
    %1224 = vmatprep.subr.mxu0 0.0
    %1225 = vmatpush1.msra.mxu0 0.0
    %1226 = vmatprep.subr.mxu0 0.0
    %1227 = vmatpush1.msra.mxu0 0.0
    %1228 = vmatprep.mubr.f32.mxu0 0.0
    %1229 = vmatmul.mubr.f32.gmra.mrb[0].mxu0 %v1163
    %v1230 = vpop.f32.mrb[0].mxu0
    %v1231 = vadd.f32 %v131, %v1230
    %v1232 = vpop.f32.mrb[0].mxu0
    %v1233 = vadd.f32 %v135, %v1232
    %1234 = vdwg.mxu0
    %1235 = vmatprep.subr.mxu0 %v65
    %1236 = vmatpush1.msra.mxu0 %v64
    %1237 = vmatprep.subr.mxu0 %v69
    %1238 = vmatpush1.msra.mxu0 %v68
    %1239 = vmatprep.subr.mxu0 %v73
    %1240 = vmatpush1.msra.mxu0 %v72
    %1241 = vmatprep.subr.mxu0 %v77
    %1242 = vmatpush1.msra.mxu0 %v76
    %1243 = vmatprep.subr.mxu0 %v81
    %1244 = vmatpush1.msra.mxu0 %v80
    %1245 = vmatprep.subr.mxu0 %v85
    %1246 = vmatpush1.msra.mxu0 %v84
    %1247 = vmatprep.subr.mxu0 %v89
    %1248 = vmatpush1.msra.mxu0 %v88
    %1249 = vmatprep.subr.mxu0 %v93
    %1250 = vmatpush1.msra.mxu0 %v92
    %1251 = vmatprep.subr.mxu0 %v97
    %1252 = vmatpush1.msra.mxu0 %v96
    %1253 = vmatprep.subr.mxu0 %v101
    %1254 = vmatpush1.msra.mxu0 %v100
    %1255 = vmatprep.subr.mxu0 %v105
    %1256 = vmatpush1.msra.mxu0 %v104
    %1257 = vmatprep.subr.mxu0 %v109
    %1258 = vmatpush1.msra.mxu0 %v108
    %1259 = vmatprep.subr.mxu0 %v113
    %1260 = vmatpush1.msra.mxu0 %v112
    %1261 = vmatprep.subr.mxu0 %v117
    %1262 = vmatpush1.msra.mxu0 %v116
    %1263 = vmatprep.subr.mxu0 %v121
    %1264 = vmatpush1.msra.mxu0 %v120
    %1265 = vmatprep.subr.mxu0 %v125
    %1266 = vmatpush1.msra.mxu0 %v124
    %1267 = vmatprep.subr.mxu0 0.0
    %1268 = vmatpush1.msra.mxu0 0.0
    %1269 = vmatprep.subr.mxu0 0.0
    %1270 = vmatpush1.msra.mxu0 0.0
    %1271 = vmatprep.subr.mxu0 0.0
    %1272 = vmatpush1.msra.mxu0 0.0
    %1273 = vmatprep.subr.mxu0 0.0
    %1274 = vmatpush1.msra.mxu0 0.0
    %1275 = vmatprep.subr.mxu0 0.0
    %1276 = vmatpush1.msra.mxu0 0.0
    %1277 = vmatprep.subr.mxu0 0.0
    %1278 = vmatpush1.msra.mxu0 0.0
    %1279 = vmatprep.subr.mxu0 0.0
    %1280 = vmatpush1.msra.mxu0 0.0
    %1281 = vmatprep.subr.mxu0 0.0
    %1282 = vmatpush1.msra.mxu0 0.0
    %1283 = vmatprep.subr.mxu0 0.0
    %1284 = vmatpush1.msra.mxu0 0.0
    %1285 = vmatprep.subr.mxu0 0.0
    %1286 = vmatpush1.msra.mxu0 0.0
    %1287 = vmatprep.subr.mxu0 0.0
    %1288 = vmatpush1.msra.mxu0 0.0
    %1289 = vmatprep.subr.mxu0 0.0
    %1290 = vmatpush1.msra.mxu0 0.0
    %1291 = vmatprep.subr.mxu0 0.0
    %1292 = vmatpush1.msra.mxu0 0.0
    %1293 = vmatprep.subr.mxu0 0.0
    %1294 = vmatpush1.msra.mxu0 0.0
    %1295 = vmatprep.subr.mxu0 0.0
    %1296 = vmatpush1.msra.mxu0 0.0
    %1297 = vmatprep.subr.mxu0 0.0
    %1298 = vmatpush1.msra.mxu0 0.0
    %1299 = vmatprep.mubr.f32.mxu0 0.0
    %1300 = vmatmul.mubr.f32.gmra.mrb[0].mxu0 %v1163
    %v1301 = vpop.f32.mrb[0].mxu0
    %v1302 = vadd.f32 %v139, %v1301
    %v1303 = vpop.f32.mrb[0].mxu0
    %v1304 = vadd.f32 %v143, %v1303
    %1305 = vdwg.mxu0
    %v1306 = vxor.u32 %v1231, 2147483648
    %v1307 = vmul.f32 %v1306, 1.442695
    %v1308 = vpow.pop %v1307
    %v1309 = vadd.f32 %v1308, 1.0
    %v1310 = vrcp.pop %v1309
    %v1311 = vmul.f32 1.0, %v1310
    %v1312 = vxor.u32 %v1233, 2147483648
    %v1313 = vmul.f32 %v1312, 1.442695
    %v1314 = vpow.pop %v1313
    %v1315 = vadd.f32 %v1314, 1.0
    %v1316 = vrcp.pop %v1315
    %v1317 = vmul.f32 1.0, %v1316
    %v1318 = vtanh.pop %v1302
    %v1319 = vxor.u32 %v1304, 2147483648
    %v1320 = vmul.f32 %v1319, 1.442695
    %v1321 = vpow.pop %v1320
    %v1322 = vadd.f32 %v1321, 1.0
    %v1323 = vrcp.pop %v1322
    %v1324 = vmul.f32 1.0, %v1323
    %v1325 = vmul.f32 %v1317, %v1158
    %v1326 = vmul.f32 %v1311, %v1318
    %v1327 = vadd.f32 %v1325, %v1326
    %v1328 = vtanh.pop %v1327
    %v1329 = vmul.f32 %v1324, %v1328
    %s1330 = scalar_lea.vmem [#allocation2], 56
    %v1331 = vld [vmem:[%s1330] sm:$0xff]
    %v1332 = vadd.f32 %v1329, %v1331
    %1333 = vmatprep.subr.mxu0 %v63
    %1334 = vmatpush1.msra.mxu0 %v62
    %1335 = vmatprep.subr.mxu0 %v67
    %1336 = vmatpush1.msra.mxu0 %v66
    %1337 = vmatprep.subr.mxu0 %v71
    %1338 = vmatpush1.msra.mxu0 %v70
    %1339 = vmatprep.subr.mxu0 %v75
    %1340 = vmatpush1.msra.mxu0 %v74
    %1341 = vmatprep.subr.mxu0 %v79
    %1342 = vmatpush1.msra.mxu0 %v78
    %1343 = vmatprep.subr.mxu0 %v83
    %1344 = vmatpush1.msra.mxu0 %v82
    %1345 = vmatprep.subr.mxu0 %v87
    %1346 = vmatpush1.msra.mxu0 %v86
    %1347 = vmatprep.subr.mxu0 %v91
    %1348 = vmatpush1.msra.mxu0 %v90
    %1349 = vmatprep.subr.mxu0 %v95
    %1350 = vmatpush1.msra.mxu0 %v94
    %1351 = vmatprep.subr.mxu0 %v99
    %1352 = vmatpush1.msra.mxu0 %v98
    %1353 = vmatprep.subr.mxu0 %v103
    %1354 = vmatpush1.msra.mxu0 %v102
    %1355 = vmatprep.subr.mxu0 %v107
    %1356 = vmatpush1.msra.mxu0 %v106
    %1357 = vmatprep.subr.mxu0 %v111
    %1358 = vmatpush1.msra.mxu0 %v110
    %1359 = vmatprep.subr.mxu0 %v115
    %1360 = vmatpush1.msra.mxu0 %v114
    %1361 = vmatprep.subr.mxu0 %v119
    %1362 = vmatpush1.msra.mxu0 %v118
    %1363 = vmatprep.subr.mxu0 %v123
    %1364 = vmatpush1.msra.mxu0 %v122
    %1365 = vmatprep.subr.mxu0 0.0
    %1366 = vmatpush1.msra.mxu0 0.0
    %1367 = vmatprep.subr.mxu0 0.0
    %1368 = vmatpush1.msra.mxu0 0.0
    %1369 = vmatprep.subr.mxu0 0.0
    %1370 = vmatpush1.msra.mxu0 0.0
    %1371 = vmatprep.subr.mxu0 0.0
    %1372 = vmatpush1.msra.mxu0 0.0
    %1373 = vmatprep.subr.mxu0 0.0
    %1374 = vmatpush1.msra.mxu0 0.0
    %1375 = vmatprep.subr.mxu0 0.0
    %1376 = vmatpush1.msra.mxu0 0.0
    %1377 = vmatprep.subr.mxu0 0.0
    %1378 = vmatpush1.msra.mxu0 0.0
    %1379 = vmatprep.subr.mxu0 0.0
    %1380 = vmatpush1.msra.mxu0 0.0
    %1381 = vmatprep.subr.mxu0 0.0
    %1382 = vmatpush1.msra.mxu0 0.0
    %1383 = vmatprep.subr.mxu0 0.0
    %1384 = vmatpush1.msra.mxu0 0.0
    %1385 = vmatprep.subr.mxu0 0.0
    %1386 = vmatpush1.msra.mxu0 0.0
    %1387 = vmatprep.subr.mxu0 0.0
    %1388 = vmatpush1.msra.mxu0 0.0
    %1389 = vmatprep.subr.mxu0 0.0
    %1390 = vmatpush1.msra.mxu0 0.0
    %1391 = vmatprep.subr.mxu0 0.0
    %1392 = vmatpush1.msra.mxu0 0.0
    %1393 = vmatprep.subr.mxu0 0.0
    %1394 = vmatpush1.msra.mxu0 0.0
    %1395 = vmatprep.subr.mxu0 0.0
    %1396 = vmatpush1.msra.mxu0 0.0
    %1397 = vmatprep.mubr.f32.mxu0 0.0
    %1398 = vmatmul.mubr.f32.gmra.mrb[0].mxu0 %v1332
    %v1399 = vpop.f32.mrb[0].mxu0
    %v1400 = vadd.f32 %v131, %v1399
    %v1401 = vpop.f32.mrb[0].mxu0
    %v1402 = vadd.f32 %v135, %v1401
    %1403 = vdwg.mxu0
    %1404 = vmatprep.subr.mxu0 %v65
    %1405 = vmatpush1.msra.mxu0 %v64
    %1406 = vmatprep.subr.mxu0 %v69
    %1407 = vmatpush1.msra.mxu0 %v68
    %1408 = vmatprep.subr.mxu0 %v73
    %1409 = vmatpush1.msra.mxu0 %v72
    %1410 = vmatprep.subr.mxu0 %v77
    %1411 = vmatpush1.msra.mxu0 %v76
    %1412 = vmatprep.subr.mxu0 %v81
    %1413 = vmatpush1.msra.mxu0 %v80
    %1414 = vmatprep.subr.mxu0 %v85
    %1415 = vmatpush1.msra.mxu0 %v84
    %1416 = vmatprep.subr.mxu0 %v89
    %1417 = vmatpush1.msra.mxu0 %v88
    %1418 = vmatprep.subr.mxu0 %v93
    %1419 = vmatpush1.msra.mxu0 %v92
    %1420 = vmatprep.subr.mxu0 %v97
    %1421 = vmatpush1.msra.mxu0 %v96
    %1422 = vmatprep.subr.mxu0 %v101
    %1423 = vmatpush1.msra.mxu0 %v100
    %1424 = vmatprep.subr.mxu0 %v105
    %1425 = vmatpush1.msra.mxu0 %v104
    %1426 = vmatprep.subr.mxu0 %v109
    %1427 = vmatpush1.msra.mxu0 %v108
    %1428 = vmatprep.subr.mxu0 %v113
    %1429 = vmatpush1.msra.mxu0 %v112
    %1430 = vmatprep.subr.mxu0 %v117
    %1431 = vmatpush1.msra.mxu0 %v116
    %1432 = vmatprep.subr.mxu0 %v121
    %1433 = vmatpush1.msra.mxu0 %v120
    %1434 = vmatprep.subr.mxu0 %v125
    %1435 = vmatpush1.msra.mxu0 %v124
    %1436 = vmatprep.subr.mxu0 0.0
    %1437 = vmatpush1.msra.mxu0 0.0
    %1438 = vmatprep.subr.mxu0 0.0
    %1439 = vmatpush1.msra.mxu0 0.0
    %1440 = vmatprep.subr.mxu0 0.0
    %1441 = vmatpush1.msra.mxu0 0.0
    %1442 = vmatprep.subr.mxu0 0.0
    %1443 = vmatpush1.msra.mxu0 0.0
    %1444 = vmatprep.subr.mxu0 0.0
    %1445 = vmatpush1.msra.mxu0 0.0
    %1446 = vmatprep.subr.mxu0 0.0
    %1447 = vmatpush1.msra.mxu0 0.0
    %1448 = vmatprep.subr.mxu0 0.0
    %1449 = vmatpush1.msra.mxu0 0.0
    %1450 = vmatprep.subr.mxu0 0.0
    %1451 = vmatpush1.msra.mxu0 0.0
    %1452 = vmatprep.subr.mxu0 0.0
    %1453 = vmatpush1.msra.mxu0 0.0
    %1454 = vmatprep.subr.mxu0 0.0
    %1455 = vmatpush1.msra.mxu0 0.0
    %1456 = vmatprep.subr.mxu0 0.0
    %1457 = vmatpush1.msra.mxu0 0.0
    %1458 = vmatprep.subr.mxu0 0.0
    %1459 = vmatpush1.msra.mxu0 0.0
    %1460 = vmatprep.subr.mxu0 0.0
    %1461 = vmatpush1.msra.mxu0 0.0
    %1462 = vmatprep.subr.mxu0 0.0
    %1463 = vmatpush1.msra.mxu0 0.0
    %1464 = vmatprep.subr.mxu0 0.0
    %1465 = vmatpush1.msra.mxu0 0.0
    %1466 = vmatprep.subr.mxu0 0.0
    %1467 = vmatpush1.msra.mxu0 0.0
    %1468 = vmatprep.mubr.f32.mxu0 0.0
    %1469 = vmatmul.mubr.f32.gmra.mrb[0].mxu0 %v1332
    %v1470 = vpop.f32.mrb[0].mxu0
    %v1471 = vadd.f32 %v139, %v1470
    %v1472 = vpop.f32.mrb[0].mxu0
    %v1473 = vadd.f32 %v143, %v1472
    %1474 = vdwg.mxu0
    %v1475 = vxor.u32 %v1400, 2147483648
    %v1476 = vmul.f32 %v1475, 1.442695
    %v1477 = vpow.pop %v1476
    %v1478 = vadd.f32 %v1477, 1.0
    %v1479 = vrcp.pop %v1478
    %v1480 = vmul.f32 1.0, %v1479
    %v1481 = vxor.u32 %v1402, 2147483648
    %v1482 = vmul.f32 %v1481, 1.442695
    %v1483 = vpow.pop %v1482
    %v1484 = vadd.f32 %v1483, 1.0
    %v1485 = vrcp.pop %v1484
    %v1486 = vmul.f32 1.0, %v1485
    %v1487 = vtanh.pop %v1471
    %v1488 = vxor.u32 %v1473, 2147483648
    %v1489 = vmul.f32 %v1488, 1.442695
    %v1490 = vpow.pop %v1489
    %v1491 = vadd.f32 %v1490, 1.0
    %v1492 = vrcp.pop %v1491
    %v1493 = vmul.f32 1.0, %v1492
    %v1494 = vmul.f32 %v1486, %v1327
    %v1495 = vmul.f32 %v1480, %v1487
    %v1496 = vadd.f32 %v1494, %v1495
    %v1497 = vtanh.pop %v1496
    %v1498 = vmul.f32 %v1493, %v1497
    %v1499 = vld [vmem:[#allocation7] sm:$0xff]
    %v1500 = vld [vmem:[#allocation7 + $0x8] sm:$0xff]
    %v1501 = vld [vmem:[#allocation7 + $0x10] sm:$0xff]
    %v1502 = vld [vmem:[#allocation7 + $0x18] sm:$0xff]
    %v1503 = vld [vmem:[#allocation7 + $0x20] sm:$0xff]
    %v1504 = vld [vmem:[#allocation7 + $0x28] sm:$0xff]
    %v1505 = vld [vmem:[#allocation7 + $0x30] sm:$0xff]
    %v1506 = vld [vmem:[#allocation7 + $0x38] sm:$0xff]
    %v1507 = vld [vmem:[#allocation7 + $0x40] sm:$0xff]
    %v1508 = vld [vmem:[#allocation7 + $0x48] sm:$0xff]
    %v1509 = vld [vmem:[#allocation7 + $0x50] sm:$0xff]
    %v1510 = vld [vmem:[#allocation7 + $0x58] sm:$0xff]
    %v1511 = vld [vmem:[#allocation7 + $0x60] sm:$0xff]
    %v1512 = vld [vmem:[#allocation7 + $0x68] sm:$0xff]
    %v1513 = vld [vmem:[#allocation7 + $0x70] sm:$0xff]
    %v1514 = vld [vmem:[#allocation7 + $0x78] sm:$0xff]
    %v1515 = vld [vmem:[%s4] sm:$0x1]
    %v1517 = vlaneseq
    %v1518 = vshrl.u32 %v1517, 7
    %v1519 = vsub.s32 0, %v1518
    %v1520 = vrot.slane %v1515, %v1519
    %1522 = vmatprep.subr.mxu0 0.0
    %1523 = vmatpush1.msra.mxu0 %v1499
    %1524 = vmatprep.subr.mxu0 0.0
    %1525 = vmatpush1.msra.mxu0 %v1500
    %1526 = vmatprep.subr.mxu0 0.0
    %1527 = vmatpush1.msra.mxu0 %v1501
    %1528 = vmatprep.subr.mxu0 0.0
    %1529 = vmatpush1.msra.mxu0 %v1502
    %1530 = vmatprep.subr.mxu0 0.0
    %1531 = vmatpush1.msra.mxu0 %v1503
    %1532 = vmatprep.subr.mxu0 0.0
    %1533 = vmatpush1.msra.mxu0 %v1504
    %1534 = vmatprep.subr.mxu0 0.0
    %1535 = vmatpush1.msra.mxu0 %v1505
    %1536 = vmatprep.subr.mxu0 0.0
    %1537 = vmatpush1.msra.mxu0 %v1506
    %1538 = vmatprep.subr.mxu0 0.0
    %1539 = vmatpush1.msra.mxu0 %v1507
    %1540 = vmatprep.subr.mxu0 0.0
    %1541 = vmatpush1.msra.mxu0 %v1508
    %1542 = vmatprep.subr.mxu0 0.0
    %1543 = vmatpush1.msra.mxu0 %v1509
    %1544 = vmatprep.subr.mxu0 0.0
    %1545 = vmatpush1.msra.mxu0 %v1510
    %1546 = vmatprep.subr.mxu0 0.0
    %1547 = vmatpush1.msra.mxu0 %v1511
    %1548 = vmatprep.subr.mxu0 0.0
    %1549 = vmatpush1.msra.mxu0 %v1512
    %1550 = vmatprep.subr.mxu0 0.0
    %1551 = vmatpush1.msra.mxu0 %v1513
    %1552 = vmatprep.subr.mxu0 0.0
    %1553 = vmatpush1.msra.mxu0 %v1514
    %1554 = vmatprep.subr.mxu0 0.0
    %1555 = vmatpush1.msra.mxu0 0.0
    %1556 = vmatprep.subr.mxu0 0.0
    %1557 = vmatpush1.msra.mxu0 0.0
    %1558 = vmatprep.subr.mxu0 0.0
    %1559 = vmatpush1.msra.mxu0 0.0
    %1560 = vmatprep.subr.mxu0 0.0
    %1561 = vmatpush1.msra.mxu0 0.0
    %1562 = vmatprep.subr.mxu0 0.0
    %1563 = vmatpush1.msra.mxu0 0.0
    %1564 = vmatprep.subr.mxu0 0.0
    %1565 = vmatpush1.msra.mxu0 0.0
    %1566 = vmatprep.subr.mxu0 0.0
    %1567 = vmatpush1.msra.mxu0 0.0
    %1568 = vmatprep.subr.mxu0 0.0
    %1569 = vmatpush1.msra.mxu0 0.0
    %1570 = vmatprep.subr.mxu0 0.0
    %1571 = vmatpush1.msra.mxu0 0.0
    %1572 = vmatprep.subr.mxu0 0.0
    %1573 = vmatpush1.msra.mxu0 0.0
    %1574 = vmatprep.subr.mxu0 0.0
    %1575 = vmatpush1.msra.mxu0 0.0
    %1576 = vmatprep.subr.mxu0 0.0
    %1577 = vmatpush1.msra.mxu0 0.0
    %1578 = vmatprep.subr.mxu0 0.0
    %1579 = vmatpush1.msra.mxu0 0.0
    %1580 = vmatprep.subr.mxu0 0.0
    %1581 = vmatpush1.msra.mxu0 0.0
    %1582 = vmatprep.subr.mxu0 0.0
    %1583 = vmatpush1.msra.mxu0 0.0
    %1584 = vmatprep.subr.mxu0 0.0
    %1585 = vmatpush1.msra.mxu0 0.0
    %1586 = vmatprep.mubr.f32.mxu0 0.0
    %1587 = vmatmul.mubr.f32.gmra.mrb[0].mxu0 %v1498
    %v1588 = vpop.f32.mrb[0].mxu0
    %v1589 = vadd.f32 %v1520, %v1588
    %v1590 = vpop.f32.mrb[0].mxu0
    %1591 = vdwg.mxu0
    %1592 = vst [vmem:[#allocation8] sm:$0xff] %v1589
    // Predicated region
    $region34: #{tpu_custom_call.1} parent=1 // pred_check
      _
    $region35: #{tpu_custom_call.1} parent=1 // pred_check_branch
      %1594 = sbr.rel (0) target = $region37
    $region36: #{tpu_custom_call.1} parent=1 // pred_region
      %s1596 = ssub.s32 128, 128
      %1597 = vsyncadd [#allocation4], %s1596
      %s1599 = sshll.u32 [#allocation8], 4
      %s1600 = int_to_ptr.vmem [resolvable:$true] %s1599
      %1602 = dma.vmem_to_hbm [thread:$0]  %s1600, 128, %s5, [#allocation4]
    $region37: #{tpu_custom_call.1} parent=1 // pred_fallthru
      _
    // Predicated region
    $region38: #{tpu_custom_call.1} parent=1 // pred_check
      _
    $region39: #{tpu_custom_call.1} parent=1 // pred_check_branch
      %1604 = sbr.rel (0) target = $region41
    $region40: #{tpu_custom_call.1} parent=1 // pred_region
      %1605 = dma.done [#allocation4], 128
    $region41: #{tpu_custom_call.1} parent=1 // pred_fallthru
      _
    %1606 = vsyncpa [#allocation3], 1
    %1607 = vsyncpa [#allocation6], 1
    %1608 = vsyncpa [#allocation4], 1

</llo_original>
